<compile_context>
chip_gen: v7x
topology: tpu7x:2x2x1
jax: 0.10.0
libtpu: 0.0.40
codegen_flags: <defaults>
</compile_context>

<pallas_src>
import functools
import math

import jax
import jax.numpy as jnp
from jax.experimental import pallas as pl
from jax.experimental.pallas import tpu as pltpu


# ---------------------------------------------------------------------------
# Pallas kernel: one TILE of TB batch elements per grid step.
# ---------------------------------------------------------------------------
def _cmeu_kernel(
    # tensor inputs (VMEM tiles)
    rgn_ref, wrd_ref, lens_ref,
    # Refinement params: fused scale/shift (D,2D)/(1,2D); stacked fc_1/fc_2 (2,D,D)/(2,1,D)
    w_ss_ref, b_ss_ref, w12_ref, b12_ref,
    # Selector params
    ws1_ref, bs1_ref, ws2_ref, bs2_ref,
    # outputs
    ref_out_ref,           # (TB, R, D) f32
    prob_out_ref,          # (TB, P)    f32
    *,
    lambda_softmax,
):
    rgn = rgn_ref[...]                      # (TB, R, D) compute dtype
    wrd = wrd_ref[...]                      # (TB, T, D) compute dtype
    lens = lens_ref[...]                    # (TB, 1)    int32
    TB, R, D = rgn.shape
    T = wrd.shape[1]
    cdt = w_ss_ref.dtype                    # MXU operand dtype (bf16 or f32)

    # ---- cross-modal attention: regions attend over the VALID words of their caption ----
    # batched dot contracting the last dims (no explicit transpose -> no XLU transpose).
    s = jnp.einsum("brd,btd->brt", rgn, wrd,
                   preferred_element_type=jnp.float32)                  # (TB, R, T) f32
    s = jnp.where(s > 0, s, 0.1 * s)                                    # leaky_relu(0.1)

    # word-validity mask built from a (TB,1,T) iota, broadcast over R.
    word_idx = jax.lax.broadcasted_iota(jnp.int32, (TB, 1, T), 2)
    valid = word_idx < lens.reshape(TB, 1, 1)                           # (TB,1,T) bool
    s = jnp.where(valid, s, 0.0)            # mask padded words BEFORE the l2-norm

    # clipped row-wise l2 normalization (rsqrt -> EUP slot, no VALU divide chain)
    inv_norm = jax.lax.rsqrt(jnp.sum(s * s, axis=-1, keepdims=True) + 1e-16)
    s = s * inv_norm

    logits = jnp.where(valid, s * lambda_softmax, jnp.float32(-1e30))
    m = jnp.max(logits, axis=-1, keepdims=True)
    e = jnp.where(valid, jnp.exp(logits - m), 0.0)
    att = e * pl.reciprocal(jnp.sum(e, axis=-1, keepdims=True) + 1e-8, approx=True)

    wei_ctx = jnp.einsum("brt,btd->brd", att.astype(cdt), wrd,
                         preferred_element_type=jnp.float32)            # (TB, R, D) f32

    # ---- feature-wise modulation + residual refinement ----
    # flatten (TB, R, D) -> (TB*R, D): one large-M matmul chain for the DxD linears.
    M = TB * R
    ctx2 = wei_ctx.reshape(M, D)
    rgn2 = rgn.reshape(M, D).astype(jnp.float32)

    # fused scale/shift projection: single (M,D)@(D,2D) matmul, slice at column D.
    ss = jnp.dot(ctx2.astype(cdt), w_ss_ref[...],
                 preferred_element_type=jnp.float32) + b_ss_ref[...]    # (M, 2D) f32
    scaling = jnp.tanh(ss[:, :D])
    shifting = ss[:, D:]

    modulated = rgn2 * scaling + shifting
    h = jnp.maximum(
        jnp.dot(modulated.astype(cdt), w12_ref[0],
                preferred_element_type=jnp.float32) + b12_ref[0], 0.0)
    modu_res = jnp.dot(h.astype(cdt), w12_ref[1],
                       preferred_element_type=jnp.float32) + b12_ref[1]
    ref_out_ref[...] = (modu_res + rgn2).reshape(TB, R, D).astype(ref_out_ref.dtype)

    # ---- selector / router: mean-pool regions -> MLP -> sigmoid gate (batched over TB) ----
    pooled = jnp.mean(rgn.astype(jnp.float32), axis=1)                  # (TB, D)
    hs = jnp.maximum(
        jnp.dot(pooled.astype(ws1_ref.dtype), ws1_ref[...],
                preferred_element_type=jnp.float32) + bs1_ref[...], 0.0)
    gate_logits = jnp.dot(hs.astype(ws2_ref.dtype), ws2_ref[...],
                          preferred_element_type=jnp.float32) + bs2_ref[...]
    prob_out_ref[...] = (1.0 / (1.0 + jnp.exp(-gate_logits))).astype(prob_out_ref.dtype)


# ---------------------------------------------------------------------------
# Wrapper
# ---------------------------------------------------------------------------
def crossmodal_enhancement_unit(rgn, img, wrd, stc, stc_lens, params,
                                lambda_softmax=4.0, batch_tile=None,
                                compute_dtype=jnp.bfloat16,
                                word_pad_multiple=128):
    # img / stc are carried for API parity with the PyTorch forward but are not
    # consumed by Refinement/Selector (same as the reference implementation).
    del img, stc

    B, R, D = rgn.shape
    T = wrd.shape[1]
    H = params["ws1"].shape[1]
    P = params["ws2"].shape[1]

    # ---- batch tile heuristic ----------------------------------------------------------
    # Prefer a tile that (a) divides B (no padding -> no post-call [:B] slice / extra HBM
    # copy) and (b) gives >= 2 grid steps so the "parallel" axis can feed both v7x TCs.
    if batch_tile is None:
        if B <= 8:
            TB = B
        else:
            TB = None
            for cand in (16, 8):
                if B % cand == 0 and B // cand >= 2:
                    TB = cand
                    break
            if TB is None:
                TB = 16 if B > 16 else 8
    else:
        TB = max(1, min(int(batch_tile), B))
    if TB < B and TB % 8 != 0:
        TB = max(8, (TB // 8) * 8)          # keep (TB, *) output blocks sublane-aligned
    nb = -(-B // TB)
    Bp = nb * TB

    # ---- pad T to a lane multiple (mask handles pad words; attention becomes lane-dense)
    if word_pad_multiple and word_pad_multiple > 1:
        Tp = -(-T // word_pad_multiple) * word_pad_multiple
    else:
        Tp = T

    rgn_p = rgn
    wrd_p = wrd
    lens_p = stc_lens.astype(jnp.int32)
    if Bp != B:
        pad = Bp - B
        rgn_p = jnp.pad(rgn_p, ((0, pad), (0, 0), (0, 0)))
        wrd_p = jnp.pad(wrd_p, ((0, pad), (0, 0), (0, 0)))
        lens_p = jnp.pad(lens_p, (0, pad))   # len 0 -> fully masked, finite output
    if Tp != T:
        wrd_p = jnp.pad(wrd_p, ((0, 0), (0, Tp - T), (0, 0)))
    lens2d = lens_p.reshape(Bp, 1)

    # ---- weights: fuse fc_scale/fc_shift into one (D,2D); stack fc_1/fc_2 -------------
    w_ss = jnp.concatenate([params["wsc"], params["wsh"]], axis=1)    # (D, 2D)
    b_ss = jnp.concatenate([params["bsc"], params["bsh"]], axis=1)    # (1, 2D)
    w12 = jnp.stack([params["w1"], params["w2"]])                     # (2, D, D)
    b12 = jnp.stack([params["b1"], params["b2"]])                     # (2, 1, D)
    ws1, bs1 = params["ws1"], params["bs1"]
    ws2, bs2 = params["ws2"], params["bs2"]

    if compute_dtype is not None:
        # bf16 matmul operands by default (f32 accumulation stays inside the kernel).
        rgn_p = rgn_p.astype(compute_dtype)
        wrd_p = wrd_p.astype(compute_dtype)
        w_ss = w_ss.astype(compute_dtype)
        w12 = w12.astype(compute_dtype)
        ws1 = ws1.astype(compute_dtype)
        ws2 = ws2.astype(compute_dtype)
    cdt = compute_dtype if compute_dtype is not None else rgn.dtype

    # ---- explicit VMEM budget (tile-padded), never below the 32 MiB default -----------
    def padded_bytes(shape, dtype):
        shape = tuple(shape)
        lead = math.prod(shape[:-2]) if len(shape) > 2 else 1
        sub = -(-shape[-2] // 8) * 8
        lane = -(-shape[-1] // 128) * 128
        return lead * sub * lane * jnp.dtype(dtype).itemsize

    acts = 2 * sum(padded_bytes(s, d) for s, d in [
        ((TB, R, D), cdt), ((TB, Tp, D), cdt), ((TB, 1), jnp.int32),
        ((TB, R, D), jnp.float32), ((TB, P), jnp.float32)])
    weights = 2 * sum(padded_bytes(s, d) for s, d in [
        ((D, 2 * D), cdt), ((1, 2 * D), jnp.float32),
        ((2, D, D), cdt), ((2, 1, D), jnp.float32),
        ((D, H), cdt), ((1, H), jnp.float32),
        ((H, P), cdt), ((1, P), jnp.float32)])
    live = (4 * padded_bytes((TB, R, Tp), jnp.float32)
            + padded_bytes((TB * R, 2 * D), jnp.float32)
            + 8 * padded_bytes((TB * R, D), jnp.float32))
    vmem_limit = int(min(128 * 2**20, max(32 * 2**20, 1.5 * (acts + weights + live))))

    kernel = functools.partial(_cmeu_kernel, lambda_softmax=lambda_softmax)

    def build_and_run(single_buffer_weights):
        # grid-invariant params: single-buffered (fetched once) when supported.
        kw = dict(pipeline_mode=pl.Buffered(1)) if single_buffer_weights else {}
        inv2 = lambda shape: pl.BlockSpec(shape, lambda g: (0, 0), **kw)
        inv3 = lambda shape: pl.BlockSpec(shape, lambda g: (0, 0, 0), **kw)

        grid_spec = pltpu.PrefetchScalarGridSpec(
            num_scalar_prefetch=0,
            grid=(nb,),
            in_specs=[
                pl.BlockSpec((TB, R, D), lambda g: (g, 0, 0)),    # rgn tile
                pl.BlockSpec((TB, Tp, D), lambda g: (g, 0, 0)),   # wrd tile (T padded)
                pl.BlockSpec((TB, 1), lambda g: (g, 0)),          # valid word counts
                inv2((D, 2 * D)), inv2((1, 2 * D)),               # fused scale/shift W, b
                inv3((2, D, D)), inv3((2, 1, D)),                 # stacked fc_1/fc_2 W, b
                inv2((D, H)), inv2((1, H)),                       # selector L1
                inv2((H, P)), inv2((1, P)),                       # selector L2
            ],
            out_specs=[
                pl.BlockSpec((TB, R, D), lambda g: (g, 0, 0)),    # refined embeddings
                pl.BlockSpec((TB, P), lambda g: (g, 0)),          # path probabilities
            ],
        )
        return pl.pallas_call(
            kernel,
            grid_spec=grid_spec,
            out_shape=(
                jax.ShapeDtypeStruct((Bp, R, D), jnp.float32),
                jax.ShapeDtypeStruct((Bp, P), jnp.float32),
            ),
            compiler_params=pltpu.CompilerParams(
                dimension_semantics=("parallel",),   # each step writes a distinct batch tile
                vmem_limit_bytes=vmem_limit,
            ),
        )(rgn_p, wrd_p, lens2d, w_ss, b_ss, w12, b12, ws1, bs1, ws2, bs2)

    try:
        rf_emb, path_prob = build_and_run(True)
    except Exception:
        # Fallback: this JAX/Mosaic build rejects pipeline_mode on BlockSpec -> default buffering.
        rf_emb, path_prob = build_and_run(False)

    if Bp != B:
        rf_emb = rf_emb[:B]
        path_prob = path_prob[:B]
    return rf_emb, path_prob


# ---------------------------------------------------------------------------
# Deterministic parameter init (nn.Linear-like uniform(-1/sqrt(fan_in), ...))
# ---------------------------------------------------------------------------
def init_params(key, embed_size, hid_selector, num_out_path):
    def linear(key, fan_in, fan_out):
        kw, kb = jax.random.split(key)
        bound = 1.0 / jnp.sqrt(jnp.float32(fan_in))
        w = jax.random.uniform(kw, (fan_in, fan_out), jnp.float32, -bound, bound)
        b = jax.random.uniform(kb, (1, fan_out), jnp.float32, -bound, bound)
        return w, b

    keys = jax.random.split(key, 6)
    wsc, bsc = linear(keys[0], embed_size, embed_size)
    wsh, bsh = linear(keys[1], embed_size, embed_size)
    w1, b1 = linear(keys[2], embed_size, embed_size)
    w2, b2 = linear(keys[3], embed_size, embed_size)
    ws1, bs1 = linear(keys[4], embed_size, hid_selector)
    ws2, bs2 = linear(keys[5], hid_selector, num_out_path)
    return dict(wsc=wsc, bsc=bsc, wsh=wsh, bsh=bsh, w1=w1, b1=b1, w2=w2, b2=b2,
                ws1=ws1, bs1=bs1, ws2=ws2, bs2=bs2)


if __name__ == "__main__":
    # small config (production configs should pick D as a multiple of 128 for lane-dense
    # stores and tile-aligned scale/shift slicing; the kernel only requires shapes as given).
    B, R, T, D = 2, 16, 8, 32          # batch, regions, words, embed_size
    HID, NUM_OUT_PATH = 32, 4
    LAMBDA_SOFTMAX_CMEU = 4.0

    key = jax.random.PRNGKey(0)
    k_rgn, k_img, k_wrd, k_stc, k_par = jax.random.split(key, 5)

    rgn = jax.random.normal(k_rgn, (B, R, D), jnp.float32)
    img = jax.random.normal(k_img, (B, D), jnp.float32)
    wrd = jax.random.normal(k_wrd, (B, T, D), jnp.float32)
    stc = jax.random.normal(k_stc, (B, D), jnp.float32)
    stc_lens = jnp.array([T, 5], dtype=jnp.int32)

    params = init_params(k_par, D, HID, NUM_OUT_PATH)

    rf_emb, path_prob = crossmodal_enhancement_unit(
        rgn, img, wrd, stc, stc_lens, params, lambda_softmax=LAMBDA_SOFTMAX_CMEU)
    jax.block_until_ready(rf_emb)
    jax.block_until_ready(path_prob)

    assert rf_emb.shape == (B, R, D)
    assert path_prob.shape == (B, NUM_OUT_PATH)
    assert bool(jnp.all(jnp.isfinite(rf_emb)))
    assert bool(jnp.all(jnp.isfinite(path_prob)))
    print("KERNEL_OK")
</pallas_src>

<mosaic_0001>
module attributes {stable_mosaic.version = 11 : i64} {
  func.func @_cmeu_kernel(%arg0: i32, %arg1: memref<2x16x32xbf16, #tpu.memory_space<vmem>>, %arg2: memref<2x128x32xbf16, #tpu.memory_space<vmem>>, %arg3: memref<2x1xi32, #tpu.memory_space<vmem>>, %arg4: memref<32x64xbf16, #tpu.memory_space<vmem>>, %arg5: memref<1x64xf32, #tpu.memory_space<vmem>>, %arg6: memref<2x32x32xbf16, #tpu.memory_space<vmem>>, %arg7: memref<2x1x32xf32, #tpu.memory_space<vmem>>, %arg8: memref<32x32xbf16, #tpu.memory_space<vmem>>, %arg9: memref<1x32xf32, #tpu.memory_space<vmem>>, %arg10: memref<32x4xbf16, #tpu.memory_space<vmem>>, %arg11: memref<1x4xf32, #tpu.memory_space<vmem>>, %arg12: memref<2x16x32xf32, #tpu.memory_space<vmem>>, %arg13: memref<2x4xf32, #tpu.memory_space<vmem>>) attributes {dimension_semantics = [#tpu.dimension_semantics<parallel>], iteration_bounds = array<i64: 1>, scalar_prefetch = 0 : i64, scratch_operands = 0 : i64, tpu.core_type = #tpu.core_type<tc>, window_params = [{transform_indices = @transform_0, window_bounds = array<i64: 2, 16, 32>}, {transform_indices = @transform_1, window_bounds = array<i64: 2, 128, 32>}, {transform_indices = @transform_2, window_bounds = array<i64: 2, 1>}, {pipeline_mode = #tpu.pipeline_mode<synchronous>, transform_indices = @transform_3, window_bounds = array<i64: 32, 64>}, {pipeline_mode = #tpu.pipeline_mode<synchronous>, transform_indices = @transform_4, window_bounds = array<i64: 1, 64>}, {pipeline_mode = #tpu.pipeline_mode<synchronous>, transform_indices = @transform_5, window_bounds = array<i64: 2, 32, 32>}, {pipeline_mode = #tpu.pipeline_mode<synchronous>, transform_indices = @transform_6, window_bounds = array<i64: 2, 1, 32>}, {pipeline_mode = #tpu.pipeline_mode<synchronous>, transform_indices = @transform_7, window_bounds = array<i64: 32, 32>}, {pipeline_mode = #tpu.pipeline_mode<synchronous>, transform_indices = @transform_8, window_bounds = array<i64: 1, 32>}, {pipeline_mode = #tpu.pipeline_mode<synchronous>, transform_indices = @transform_9, window_bounds = array<i64: 32, 4>}, {pipeline_mode = #tpu.pipeline_mode<synchronous>, transform_indices = @transform_10, window_bounds = array<i64: 1, 4>}, {transform_indices = @transform_11, window_bounds = array<i64: 2, 16, 32>}, {transform_indices = @transform_12, window_bounds = array<i64: 2, 4>}]} {
    %c0 = arith.constant 0 : index
    %c0_0 = arith.constant 0 : index
    %c0_1 = arith.constant 0 : index
    %0 = vector.load %arg1[%c0, %c0_0, %c0_1] : memref<2x16x32xbf16, #tpu.memory_space<vmem>>, vector<2x16x32xbf16>
    %c0_2 = arith.constant 0 : index
    %c0_3 = arith.constant 0 : index
    %c0_4 = arith.constant 0 : index
    %1 = vector.load %arg2[%c0_2, %c0_3, %c0_4] : memref<2x128x32xbf16, #tpu.memory_space<vmem>>, vector<2x128x32xbf16>
    %c0_5 = arith.constant 0 : index
    %c0_6 = arith.constant 0 : index
    %2 = vector.load %arg3[%c0_5, %c0_6] : memref<2x1xi32, #tpu.memory_space<vmem>>, vector<2x1xi32>
    "tpu.trace_start"() <{level = 10 : i32, message = "brd,btd->brt"}> : () -> ()
    %cst = arith.constant dense<0.000000e+00> : vector<2x16x128xf32>
    %3 = tpu.matmul %0, %1, %cst {dimension_numbers = #tpu.dot_dimension_numbers<[2], [2], [1], [1], [0, 0, 0, 1, 1, 1], [0], [0]>} : vector<2x16x32xbf16>, vector<2x128x32xbf16>, vector<2x16x128xf32> -> vector<2x16x128xf32>
    %cst_7 = arith.constant 0.000000e+00 : f32
    "tpu.trace_stop"() : () -> ()
    %4 = vector.broadcast %cst_7 : f32 to vector<2x16x128xf32>
    %5 = arith.cmpf ogt, %3, %4 : vector<2x16x128xf32>
    %cst_8 = arith.constant 1.000000e-01 : f32
    %6 = vector.broadcast %cst_8 : f32 to vector<2x16x128xf32>
    %7 = arith.mulf %6, %3 : vector<2x16x128xf32>
    %8 = arith.select %5, %3, %7 : vector<2x16x128xi1>, vector<2x16x128xf32>
    %9 = tpu.iota {dimensions = array<i32: 2>} : vector<2x1x128xi32>
    %10 = vector.shape_cast %2 : vector<2x1xi32> to vector<2x1x1xi32>
    %11 = vector.broadcast %10 : vector<2x1x1xi32> to vector<2x1x128xi32>
    %12 = arith.cmpi slt, %9, %11 : vector<2x1x128xi32>
    %cst_9 = arith.constant 0.000000e+00 : f32
    %13 = vector.shape_cast %12 : vector<2x1x128xi1> to vector<2x1x128xi1>
    %14 = vector.broadcast %13 : vector<2x1x128xi1> to vector<2x16x128xi1>
    %15 = vector.broadcast %cst_9 : f32 to vector<2x16x128xf32>
    %16 = arith.select %14, %8, %15 : vector<2x16x128xi1>, vector<2x16x128xf32>
    %17 = arith.mulf %16, %16 : vector<2x16x128xf32>
    %cst_10 = arith.constant dense<0.000000e+00> : vector<2x16xf32>
    %18 = vector.multi_reduction <add>, %17, %cst_10 [2] : vector<2x16x128xf32> to vector<2x16xf32>
    %19 = vector.shape_cast %18 : vector<2x16xf32> to vector<2x16x1xf32>
    %cst_11 = arith.constant 1.000000e-16 : f32
    %20 = vector.broadcast %cst_11 : f32 to vector<2x16x1xf32>
    %21 = arith.addf %19, %20 : vector<2x16x1xf32>
    %22 = math.rsqrt %21 : vector<2x16x1xf32>
    %23 = vector.broadcast %22 : vector<2x16x1xf32> to vector<2x16x128xf32>
    %24 = arith.mulf %16, %23 : vector<2x16x128xf32>
    %cst_12 = arith.constant 4.000000e+00 : f32
    %25 = vector.broadcast %cst_12 : f32 to vector<2x16x128xf32>
    %26 = arith.mulf %24, %25 : vector<2x16x128xf32>
    %cst_13 = arith.constant -1.000000e+30 : f32
    %27 = vector.shape_cast %12 : vector<2x1x128xi1> to vector<2x1x128xi1>
    %28 = vector.broadcast %27 : vector<2x1x128xi1> to vector<2x16x128xi1>
    %29 = vector.broadcast %cst_13 : f32 to vector<2x16x128xf32>
    %30 = arith.select %28, %26, %29 : vector<2x16x128xi1>, vector<2x16x128xf32>
    %cst_14 = arith.constant dense<0xFF800000> : vector<2x16xf32>
    %31 = vector.multi_reduction <maximumf>, %30, %cst_14 [2] : vector<2x16x128xf32> to vector<2x16xf32>
    %32 = vector.shape_cast %31 : vector<2x16xf32> to vector<2x16x1xf32>
    %33 = vector.broadcast %32 : vector<2x16x1xf32> to vector<2x16x128xf32>
    %34 = arith.subf %30, %33 : vector<2x16x128xf32>
    %35 = math.exp %34 : vector<2x16x128xf32>
    %cst_15 = arith.constant 0.000000e+00 : f32
    %36 = vector.shape_cast %12 : vector<2x1x128xi1> to vector<2x1x128xi1>
    %37 = vector.broadcast %36 : vector<2x1x128xi1> to vector<2x16x128xi1>
    %38 = vector.broadcast %cst_15 : f32 to vector<2x16x128xf32>
    %39 = arith.select %37, %35, %38 : vector<2x16x128xi1>, vector<2x16x128xf32>
    %cst_16 = arith.constant dense<0.000000e+00> : vector<2x16xf32>
    %40 = vector.multi_reduction <add>, %39, %cst_16 [2] : vector<2x16x128xf32> to vector<2x16xf32>
    %41 = vector.shape_cast %40 : vector<2x16xf32> to vector<2x16x1xf32>
    %cst_17 = arith.constant 9.99999993E-9 : f32
    %42 = vector.broadcast %cst_17 : f32 to vector<2x16x1xf32>
    %43 = arith.addf %41, %42 : vector<2x16x1xf32>
    %44 = tpu.reciprocal %43 {approx = true} : vector<2x16x1xf32> -> vector<2x16x1xf32>
    %45 = vector.broadcast %44 : vector<2x16x1xf32> to vector<2x16x128xf32>
    %46 = arith.mulf %39, %45 : vector<2x16x128xf32>
    %47 = arith.truncf %46 : vector<2x16x128xf32> to vector<2x16x128xbf16>
    "tpu.trace_start"() <{level = 10 : i32, message = "brt,btd->brd"}> : () -> ()
    %cst_18 = arith.constant dense<0.000000e+00> : vector<2x16x32xf32>
    %48 = tpu.matmul %47, %1, %cst_18 {dimension_numbers = #tpu.dot_dimension_numbers<[2], [1], [1], [2], [0, 0, 0, 1, 1, 2], [0], [0]>} : vector<2x16x128xbf16>, vector<2x128x32xbf16>, vector<2x16x32xf32> -> vector<2x16x32xf32>
    "tpu.trace_stop"() : () -> ()
    %49 = vector.shape_cast %48 : vector<2x16x32xf32> to vector<32x32xf32>
    %50 = vector.shape_cast %0 : vector<2x16x32xbf16> to vector<32x32xbf16>
    %51 = arith.extf %50 : vector<32x32xbf16> to vector<32x32xf32>
    %52 = arith.truncf %49 : vector<32x32xf32> to vector<32x32xbf16>
    %c0_19 = arith.constant 0 : index
    %c0_20 = arith.constant 0 : index
    %53 = vector.load %arg4[%c0_19, %c0_20] : memref<32x64xbf16, #tpu.memory_space<vmem>>, vector<32x64xbf16>
    %cst_21 = arith.constant dense<0.000000e+00> : vector<32x64xf32>
    %54 = tpu.matmul %52, %53, %cst_21 {dimension_numbers = #tpu.dot_dimension_numbers<[1], [0], [0], [1], [0, 0, 1, 1], [], []>} : vector<32x32xbf16>, vector<32x64xbf16>, vector<32x64xf32> -> vector<32x64xf32>
    %c0_22 = arith.constant 0 : index
    %c0_23 = arith.constant 0 : index
    %55 = vector.load %arg5[%c0_22, %c0_23] : memref<1x64xf32, #tpu.memory_space<vmem>>, vector<1x64xf32>
    %56 = vector.broadcast %55 : vector<1x64xf32> to vector<32x64xf32>
    %57 = arith.addf %54, %56 : vector<32x64xf32>
    %58 = vector.extract_strided_slice %57 {offsets = [0, 0], sizes = [32, 32], strides = [1, 1]} : vector<32x64xf32> to vector<32x32xf32>
    %59 = math.tanh %58 : vector<32x32xf32>
    %60 = vector.extract_strided_slice %57 {offsets = [0, 32], sizes = [32, 32], strides = [1, 1]} : vector<32x64xf32> to vector<32x32xf32>
    %61 = arith.mulf %51, %59 : vector<32x32xf32>
    %62 = arith.addf %61, %60 : vector<32x32xf32>
    %63 = arith.truncf %62 : vector<32x32xf32> to vector<32x32xbf16>
    %c0_24 = arith.constant 0 : index
    %c0_25 = arith.constant 0 : index
    %c0_26 = arith.constant 0 : index
    %64 = vector.load %arg6[%c0_24, %c0_25, %c0_26] : memref<2x32x32xbf16, #tpu.memory_space<vmem>>, vector<1x32x32xbf16>
    %65 = vector.shape_cast %64 : vector<1x32x32xbf16> to vector<32x32xbf16>
    %cst_27 = arith.constant dense<0.000000e+00> : vector<32x32xf32>
    %66 = tpu.matmul %63, %65, %cst_27 {dimension_numbers = #tpu.dot_dimension_numbers<[1], [0], [0], [1], [0, 0, 1, 1], [], []>} : vector<32x32xbf16>, vector<32x32xbf16>, vector<32x32xf32> -> vector<32x32xf32>
    %c0_28 = arith.constant 0 : index
    %c0_29 = arith.constant 0 : index
    %c0_30 = arith.constant 0 : index
    %67 = vector.load %arg7[%c0_28, %c0_29, %c0_30] : memref<2x1x32xf32, #tpu.memory_space<vmem>>, vector<1x1x32xf32>
    %68 = vector.shape_cast %67 : vector<1x1x32xf32> to vector<1x32xf32>
    %69 = vector.broadcast %68 : vector<1x32xf32> to vector<32x32xf32>
    %70 = arith.addf %66, %69 : vector<32x32xf32>
    %cst_31 = arith.constant 0.000000e+00 : f32
    %71 = vector.broadcast %cst_31 : f32 to vector<32x32xf32>
    %72 = arith.maximumf %70, %71 : vector<32x32xf32>
    %73 = arith.truncf %72 : vector<32x32xf32> to vector<32x32xbf16>
    %c1 = arith.constant 1 : index
    %c0_32 = arith.constant 0 : index
    %c0_33 = arith.constant 0 : index
    %74 = vector.load %arg6[%c1, %c0_32, %c0_33] : memref<2x32x32xbf16, #tpu.memory_space<vmem>>, vector<1x32x32xbf16>
    %75 = vector.shape_cast %74 : vector<1x32x32xbf16> to vector<32x32xbf16>
    %cst_34 = arith.constant dense<0.000000e+00> : vector<32x32xf32>
    %76 = tpu.matmul %73, %75, %cst_34 {dimension_numbers = #tpu.dot_dimension_numbers<[1], [0], [0], [1], [0, 0, 1, 1], [], []>} : vector<32x32xbf16>, vector<32x32xbf16>, vector<32x32xf32> -> vector<32x32xf32>
    %c1_35 = arith.constant 1 : index
    %c0_36 = arith.constant 0 : index
    %c0_37 = arith.constant 0 : index
    %77 = vector.load %arg7[%c1_35, %c0_36, %c0_37] : memref<2x1x32xf32, #tpu.memory_space<vmem>>, vector<1x1x32xf32>
    %78 = vector.shape_cast %77 : vector<1x1x32xf32> to vector<1x32xf32>
    %79 = vector.broadcast %78 : vector<1x32xf32> to vector<32x32xf32>
    %80 = arith.addf %76, %79 : vector<32x32xf32>
    %81 = arith.addf %80, %51 : vector<32x32xf32>
    %82 = vector.shape_cast %81 : vector<32x32xf32> to vector<2x16x32xf32>
    %c0_38 = arith.constant 0 : index
    %c0_39 = arith.constant 0 : index
    %c0_40 = arith.constant 0 : index
    %83 = vector.load %arg12[%c0_38, %c0_39, %c0_40] : memref<2x16x32xf32, #tpu.memory_space<vmem>>, vector<2x16x32xf32>
    tpu.vector_store %arg12[%c0_38, %c0_39, %c0_40], %82 {strides = array<i32>} : memref<2x16x32xf32, #tpu.memory_space<vmem>>, vector<2x16x32xf32>,
    %84 = arith.extf %0 : vector<2x16x32xbf16> to vector<2x16x32xf32>
    %cst_41 = arith.constant dense<0.000000e+00> : vector<2x32xf32>
    %85 = vector.multi_reduction <add>, %84, %cst_41 [1] : vector<2x16x32xf32> to vector<2x32xf32>
    %cst_42 = arith.constant 1.600000e+01 : f32
    %86 = vector.broadcast %cst_42 : f32 to vector<2x32xf32>
    %87 = arith.divf %85, %86 : vector<2x32xf32>
    %88 = arith.truncf %87 : vector<2x32xf32> to vector<2x32xbf16>
    %c0_43 = arith.constant 0 : index
    %c0_44 = arith.constant 0 : index
    %89 = vector.load %arg8[%c0_43, %c0_44] : memref<32x32xbf16, #tpu.memory_space<vmem>>, vector<32x32xbf16>
    %cst_45 = arith.constant dense<0.000000e+00> : vector<2x32xf32>
    %90 = tpu.matmul %88, %89, %cst_45 {dimension_numbers = #tpu.dot_dimension_numbers<[1], [0], [0], [1], [0, 0, 1, 1], [], []>} : vector<2x32xbf16>, vector<32x32xbf16>, vector<2x32xf32> -> vector<2x32xf32>
    %c0_46 = arith.constant 0 : index
    %c0_47 = arith.constant 0 : index
    %91 = vector.load %arg9[%c0_46, %c0_47] : memref<1x32xf32, #tpu.memory_space<vmem>>, vector<1x32xf32>
    %92 = vector.broadcast %91 : vector<1x32xf32> to vector<2x32xf32>
    %93 = arith.addf %90, %92 : vector<2x32xf32>
    %cst_48 = arith.constant 0.000000e+00 : f32
    %94 = vector.broadcast %cst_48 : f32 to vector<2x32xf32>
    %95 = arith.maximumf %93, %94 : vector<2x32xf32>
    %96 = arith.truncf %95 : vector<2x32xf32> to vector<2x32xbf16>
    %c0_49 = arith.constant 0 : index
    %c0_50 = arith.constant 0 : index
    %97 = vector.load %arg10[%c0_49, %c0_50] : memref<32x4xbf16, #tpu.memory_space<vmem>>, vector<32x4xbf16>
    %cst_51 = arith.constant dense<0.000000e+00> : vector<2x4xf32>
    %98 = tpu.matmul %96, %97, %cst_51 {dimension_numbers = #tpu.dot_dimension_numbers<[1], [0], [0], [1], [0, 0, 1, 1], [], []>} : vector<2x32xbf16>, vector<32x4xbf16>, vector<2x4xf32> -> vector<2x4xf32>
    %c0_52 = arith.constant 0 : index
    %c0_53 = arith.constant 0 : index
    %99 = vector.load %arg11[%c0_52, %c0_53] : memref<1x4xf32, #tpu.memory_space<vmem>>, vector<1x4xf32>
    %100 = vector.broadcast %99 : vector<1x4xf32> to vector<2x4xf32>
    %101 = arith.addf %98, %100 : vector<2x4xf32>
    %cst_54 = arith.constant 0.000000e+00 : f32
    %102 = vector.broadcast %cst_54 : f32 to vector<2x4xf32>
    %103 = arith.subf %102, %101 : vector<2x4xf32>
    %104 = math.exp %103 : vector<2x4xf32>
    %cst_55 = arith.constant 1.000000e+00 : f32
    %105 = vector.broadcast %cst_55 : f32 to vector<2x4xf32>
    %106 = arith.addf %105, %104 : vector<2x4xf32>
    %cst_56 = arith.constant 1.000000e+00 : f32
    %107 = vector.broadcast %cst_56 : f32 to vector<2x4xf32>
    %108 = arith.divf %107, %106 : vector<2x4xf32>
    %c0_57 = arith.constant 0 : index
    %c0_58 = arith.constant 0 : index
    %109 = vector.load %arg13[%c0_57, %c0_58] : memref<2x4xf32, #tpu.memory_space<vmem>>, vector<2x4xf32>
    tpu.vector_store %arg13[%c0_57, %c0_58], %108 {strides = array<i32>} : memref<2x4xf32, #tpu.memory_space<vmem>>, vector<2x4xf32>,
    return
  }
  func.func @transform_0(%arg0: i32) -> (i32, i32, i32) {
    %c0_i32 = arith.constant 0 : i32
    %c0_i32_0 = arith.constant 0 : i32
    %c0_i32_1 = arith.constant 0 : i32
    return %arg0, %c0_i32, %c0_i32_0 : i32, i32, i32
  }
  func.func @transform_1(%arg0: i32) -> (i32, i32, i32) {
    %c0_i32 = arith.constant 0 : i32
    %c0_i32_0 = arith.constant 0 : i32
    %c0_i32_1 = arith.constant 0 : i32
    return %arg0, %c0_i32, %c0_i32_0 : i32, i32, i32
  }
  func.func @transform_2(%arg0: i32) -> (i32, i32) {
    %c0_i32 = arith.constant 0 : i32
    %c0_i32_0 = arith.constant 0 : i32
    return %arg0, %c0_i32 : i32, i32
  }
  func.func @transform_3(%arg0: i32) -> (i32, i32) {
    %c0_i32 = arith.constant 0 : i32
    %c0_i32_0 = arith.constant 0 : i32
    %c0_i32_1 = arith.constant 0 : i32
    return %c0_i32, %c0_i32_0 : i32, i32
  }
  func.func @transform_4(%arg0: i32) -> (i32, i32) {
    %c0_i32 = arith.constant 0 : i32
    %c0_i32_0 = arith.constant 0 : i32
    %c0_i32_1 = arith.constant 0 : i32
    return %c0_i32, %c0_i32_0 : i32, i32
  }
  func.func @transform_5(%arg0: i32) -> (i32, i32, i32) {
    %c0_i32 = arith.constant 0 : i32
    %c0_i32_0 = arith.constant 0 : i32
    %c0_i32_1 = arith.constant 0 : i32
    %c0_i32_2 = arith.constant 0 : i32
    return %c0_i32, %c0_i32_0, %c0_i32_1 : i32, i32, i32
  }
  func.func @transform_6(%arg0: i32) -> (i32, i32, i32) {
    %c0_i32 = arith.constant 0 : i32
    %c0_i32_0 = arith.constant 0 : i32
    %c0_i32_1 = arith.constant 0 : i32
    %c0_i32_2 = arith.constant 0 : i32
    return %c0_i32, %c0_i32_0, %c0_i32_1 : i32, i32, i32
  }
  func.func @transform_7(%arg0: i32) -> (i32, i32) {
    %c0_i32 = arith.constant 0 : i32
    %c0_i32_0 = arith.constant 0 : i32
    %c0_i32_1 = arith.constant 0 : i32
    return %c0_i32, %c0_i32_0 : i32, i32
  }
  func.func @transform_8(%arg0: i32) -> (i32, i32) {
    %c0_i32 = arith.constant 0 : i32
    %c0_i32_0 = arith.constant 0 : i32
    %c0_i32_1 = arith.constant 0 : i32
    return %c0_i32, %c0_i32_0 : i32, i32
  }
  func.func @transform_9(%arg0: i32) -> (i32, i32) {
    %c0_i32 = arith.constant 0 : i32
    %c0_i32_0 = arith.constant 0 : i32
    %c0_i32_1 = arith.constant 0 : i32
    return %c0_i32, %c0_i32_0 : i32, i32
  }
  func.func @transform_10(%arg0: i32) -> (i32, i32) {
    %c0_i32 = arith.constant 0 : i32
    %c0_i32_0 = arith.constant 0 : i32
    %c0_i32_1 = arith.constant 0 : i32
    return %c0_i32, %c0_i32_0 : i32, i32
  }
  func.func @transform_11(%arg0: i32) -> (i32, i32, i32) {
    %c0_i32 = arith.constant 0 : i32
    %c0_i32_0 = arith.constant 0 : i32
    %c0_i32_1 = arith.constant 0 : i32
    return %arg0, %c0_i32, %c0_i32_0 : i32, i32, i32
  }
  func.func @transform_12(%arg0: i32) -> (i32, i32) {
    %c0_i32 = arith.constant 0 : i32
    %c0_i32_0 = arith.constant 0 : i32
    return %arg0, %c0_i32 : i32, i32
  }
}

module attributes {stable_mosaic.version = 11 : i64} {
  func.func @_cmeu_kernel(%arg0: i32, %arg1: memref<2x16x32xbf16, #tpu.memory_space<vmem>>, %arg2: memref<2x128x32xbf16, #tpu.memory_space<vmem>>, %arg3: memref<2x1xi32, #tpu.memory_space<vmem>>, %arg4: memref<32x64xbf16, #tpu.memory_space<vmem>>, %arg5: memref<1x64xf32, #tpu.memory_space<vmem>>, %arg6: memref<2x32x32xbf16, #tpu.memory_space<vmem>>, %arg7: memref<2x1x32xf32, #tpu.memory_space<vmem>>, %arg8: memref<32x32xbf16, #tpu.memory_space<vmem>>, %arg9: memref<1x32xf32, #tpu.memory_space<vmem>>, %arg10: memref<32x4xbf16, #tpu.memory_space<vmem>>, %arg11: memref<1x4xf32, #tpu.memory_space<vmem>>, %arg12: memref<2x16x32xf32, #tpu.memory_space<vmem>>, %arg13: memref<2x4xf32, #tpu.memory_space<vmem>>) attributes {dimension_semantics = [#tpu.dimension_semantics<parallel>], iteration_bounds = array<i64: 1>, scalar_prefetch = 0 : i64, scratch_operands = 0 : i64, tpu.core_type = #tpu.core_type<tc>, window_params = [{transform_indices = @transform_0, window_bounds = array<i64: 2, 16, 32>}, {transform_indices = @transform_1, window_bounds = array<i64: 2, 128, 32>}, {transform_indices = @transform_2, window_bounds = array<i64: 2, 1>}, {pipeline_mode = #tpu.pipeline_mode<synchronous>, transform_indices = @transform_3, window_bounds = array<i64: 32, 64>}, {pipeline_mode = #tpu.pipeline_mode<synchronous>, transform_indices = @transform_4, window_bounds = array<i64: 1, 64>}, {pipeline_mode = #tpu.pipeline_mode<synchronous>, transform_indices = @transform_5, window_bounds = array<i64: 2, 32, 32>}, {pipeline_mode = #tpu.pipeline_mode<synchronous>, transform_indices = @transform_6, window_bounds = array<i64: 2, 1, 32>}, {pipeline_mode = #tpu.pipeline_mode<synchronous>, transform_indices = @transform_7, window_bounds = array<i64: 32, 32>}, {pipeline_mode = #tpu.pipeline_mode<synchronous>, transform_indices = @transform_8, window_bounds = array<i64: 1, 32>}, {pipeline_mode = #tpu.pipeline_mode<synchronous>, transform_indices = @transform_9, window_bounds = array<i64: 32, 4>}, {pipeline_mode = #tpu.pipeline_mode<synchronous>, transform_indices = @transform_10, window_bounds = array<i64: 1, 4>}, {transform_indices = @transform_11, window_bounds = array<i64: 2, 16, 32>}, {transform_indices = @transform_12, window_bounds = array<i64: 2, 4>}]} {
    %c0 = arith.constant 0 : index
    %c0_0 = arith.constant 0 : index
    %c0_1 = arith.constant 0 : index
    %0 = vector.load %arg1[%c0, %c0_0, %c0_1] : memref<2x16x32xbf16, #tpu.memory_space<vmem>>, vector<2x16x32xbf16>
    %c0_2 = arith.constant 0 : index
    %c0_3 = arith.constant 0 : index
    %c0_4 = arith.constant 0 : index
    %1 = vector.load %arg2[%c0_2, %c0_3, %c0_4] : memref<2x128x32xbf16, #tpu.memory_space<vmem>>, vector<2x128x32xbf16>
    %c0_5 = arith.constant 0 : index
    %c0_6 = arith.constant 0 : index
    %2 = vector.load %arg3[%c0_5, %c0_6] : memref<2x1xi32, #tpu.memory_space<vmem>>, vector<2x1xi32>
    "tpu.trace_start"() <{level = 10 : i32, message = "brd,btd->brt"}> : () -> ()
    %cst = arith.constant dense<0.000000e+00> : vector<2x16x128xf32>
    %3 = tpu.matmul %0, %1, %cst {dimension_numbers = #tpu.dot_dimension_numbers<[2], [2], [1], [1], [0, 0, 0, 1, 1, 1], [0], [0]>} : vector<2x16x32xbf16>, vector<2x128x32xbf16>, vector<2x16x128xf32> -> vector<2x16x128xf32>
    %cst_7 = arith.constant 0.000000e+00 : f32
    "tpu.trace_stop"() : () -> ()
    %4 = vector.broadcast %cst_7 : f32 to vector<2x16x128xf32>
    %5 = arith.cmpf ogt, %3, %4 : vector<2x16x128xf32>
    %cst_8 = arith.constant 1.000000e-01 : f32
    %6 = vector.broadcast %cst_8 : f32 to vector<2x16x128xf32>
    %7 = arith.mulf %6, %3 : vector<2x16x128xf32>
    %8 = arith.select %5, %3, %7 : vector<2x16x128xi1>, vector<2x16x128xf32>
    %9 = tpu.iota {dimensions = array<i32: 2>} : vector<2x1x128xi32>
    %10 = vector.shape_cast %2 : vector<2x1xi32> to vector<2x1x1xi32>
    %11 = vector.broadcast %10 : vector<2x1x1xi32> to vector<2x1x128xi32>
    %12 = arith.cmpi slt, %9, %11 : vector<2x1x128xi32>
    %cst_9 = arith.constant 0.000000e+00 : f32
    %13 = vector.shape_cast %12 : vector<2x1x128xi1> to vector<2x1x128xi1>
    %14 = vector.broadcast %13 : vector<2x1x128xi1> to vector<2x16x128xi1>
    %15 = vector.broadcast %cst_9 : f32 to vector<2x16x128xf32>
    %16 = arith.select %14, %8, %15 : vector<2x16x128xi1>, vector<2x16x128xf32>
    %17 = arith.mulf %16, %16 : vector<2x16x128xf32>
    %cst_10 = arith.constant dense<0.000000e+00> : vector<2x16xf32>
    %18 = vector.multi_reduction <add>, %17, %cst_10 [2] : vector<2x16x128xf32> to vector<2x16xf32>
    %19 = vector.shape_cast %18 : vector<2x16xf32> to vector<2x16x1xf32>
    %cst_11 = arith.constant 1.000000e-16 : f32
    %20 = vector.broadcast %cst_11 : f32 to vector<2x16x1xf32>
    %21 = arith.addf %19, %20 : vector<2x16x1xf32>
    %22 = math.rsqrt %21 : vector<2x16x1xf32>
    %23 = vector.broadcast %22 : vector<2x16x1xf32> to vector<2x16x128xf32>
    %24 = arith.mulf %16, %23 : vector<2x16x128xf32>
    %cst_12 = arith.constant 4.000000e+00 : f32
    %25 = vector.broadcast %cst_12 : f32 to vector<2x16x128xf32>
    %26 = arith.mulf %24, %25 : vector<2x16x128xf32>
    %cst_13 = arith.constant -1.000000e+30 : f32
    %27 = vector.shape_cast %12 : vector<2x1x128xi1> to vector<2x1x128xi1>
    %28 = vector.broadcast %27 : vector<2x1x128xi1> to vector<2x16x128xi1>
    %29 = vector.broadcast %cst_13 : f32 to vector<2x16x128xf32>
    %30 = arith.select %28, %26, %29 : vector<2x16x128xi1>, vector<2x16x128xf32>
    %cst_14 = arith.constant dense<0xFF800000> : vector<2x16xf32>
    %31 = vector.multi_reduction <maximumf>, %30, %cst_14 [2] : vector<2x16x128xf32> to vector<2x16xf32>
    %32 = vector.shape_cast %31 : vector<2x16xf32> to vector<2x16x1xf32>
    %33 = vector.broadcast %32 : vector<2x16x1xf32> to vector<2x16x128xf32>
    %34 = arith.subf %30, %33 : vector<2x16x128xf32>
    %35 = math.exp %34 : vector<2x16x128xf32>
    %cst_15 = arith.constant 0.000000e+00 : f32
    %36 = vector.shape_cast %12 : vector<2x1x128xi1> to vector<2x1x128xi1>
    %37 = vector.broadcast %36 : vector<2x1x128xi1> to vector<2x16x128xi1>
    %38 = vector.broadcast %cst_15 : f32 to vector<2x16x128xf32>
    %39 = arith.select %37, %35, %38 : vector<2x16x128xi1>, vector<2x16x128xf32>
    %cst_16 = arith.constant dense<0.000000e+00> : vector<2x16xf32>
    %40 = vector.multi_reduction <add>, %39, %cst_16 [2] : vector<2x16x128xf32> to vector<2x16xf32>
    %41 = vector.shape_cast %40 : vector<2x16xf32> to vector<2x16x1xf32>
    %cst_17 = arith.constant 9.99999993E-9 : f32
    %42 = vector.broadcast %cst_17 : f32 to vector<2x16x1xf32>
    %43 = arith.addf %41, %42 : vector<2x16x1xf32>
    %44 = tpu.reciprocal %43 {approx = true} : vector<2x16x1xf32> -> vector<2x16x1xf32>
    %45 = vector.broadcast %44 : vector<2x16x1xf32> to vector<2x16x128xf32>
    %46 = arith.mulf %39, %45 : vector<2x16x128xf32>
    %47 = arith.truncf %46 : vector<2x16x128xf32> to vector<2x16x128xbf16>
    "tpu.trace_start"() <{level = 10 : i32, message = "brt,btd->brd"}> : () -> ()
    %cst_18 = arith.constant dense<0.000000e+00> : vector<2x16x32xf32>
    %48 = tpu.matmul %47, %1, %cst_18 {dimension_numbers = #tpu.dot_dimension_numbers<[2], [1], [1], [2], [0, 0, 0, 1, 1, 2], [0], [0]>} : vector<2x16x128xbf16>, vector<2x128x32xbf16>, vector<2x16x32xf32> -> vector<2x16x32xf32>
    "tpu.trace_stop"() : () -> ()
    %49 = vector.shape_cast %48 : vector<2x16x32xf32> to vector<32x32xf32>
    %50 = vector.shape_cast %0 : vector<2x16x32xbf16> to vector<32x32xbf16>
    %51 = arith.extf %50 : vector<32x32xbf16> to vector<32x32xf32>
    %52 = arith.truncf %49 : vector<32x32xf32> to vector<32x32xbf16>
    %c0_19 = arith.constant 0 : index
    %c0_20 = arith.constant 0 : index
    %53 = vector.load %arg4[%c0_19, %c0_20] : memref<32x64xbf16, #tpu.memory_space<vmem>>, vector<32x64xbf16>
    %cst_21 = arith.constant dense<0.000000e+00> : vector<32x64xf32>
    %54 = tpu.matmul %52, %53, %cst_21 {dimension_numbers = #tpu.dot_dimension_numbers<[1], [0], [0], [1], [0, 0, 1, 1], [], []>} : vector<32x32xbf16>, vector<32x64xbf16>, vector<32x64xf32> -> vector<32x64xf32>
    %c0_22 = arith.constant 0 : index
    %c0_23 = arith.constant 0 : index
    %55 = vector.load %arg5[%c0_22, %c0_23] : memref<1x64xf32, #tpu.memory_space<vmem>>, vector<1x64xf32>
    %56 = vector.broadcast %55 : vector<1x64xf32> to vector<32x64xf32>
    %57 = arith.addf %54, %56 : vector<32x64xf32>
    %58 = vector.extract_strided_slice %57 {offsets = [0, 0], sizes = [32, 32], strides = [1, 1]} : vector<32x64xf32> to vector<32x32xf32>
    %59 = math.tanh %58 : vector<32x32xf32>
    %60 = vector.extract_strided_slice %57 {offsets = [0, 32], sizes = [32, 32], strides = [1, 1]} : vector<32x64xf32> to vector<32x32xf32>
    %61 = arith.mulf %51, %59 : vector<32x32xf32>
    %62 = arith.addf %61, %60 : vector<32x32xf32>
    %63 = arith.truncf %62 : vector<32x32xf32> to vector<32x32xbf16>
    %c0_24 = arith.constant 0 : index
    %c0_25 = arith.constant 0 : index
    %c0_26 = arith.constant 0 : index
    %64 = vector.load %arg6[%c0_24, %c0_25, %c0_26] : memref<2x32x32xbf16, #tpu.memory_space<vmem>>, vector<1x32x32xbf16>
    %65 = vector.shape_cast %64 : vector<1x32x32xbf16> to vector<32x32xbf16>
    %cst_27 = arith.constant dense<0.000000e+00> : vector<32x32xf32>
    %66 = tpu.matmul %63, %65, %cst_27 {dimension_numbers = #tpu.dot_dimension_numbers<[1], [0], [0], [1], [0, 0, 1, 1], [], []>} : vector<32x32xbf16>, vector<32x32xbf16>, vector<32x32xf32> -> vector<32x32xf32>
    %c0_28 = arith.constant 0 : index
    %c0_29 = arith.constant 0 : index
    %c0_30 = arith.constant 0 : index
    %67 = vector.load %arg7[%c0_28, %c0_29, %c0_30] : memref<2x1x32xf32, #tpu.memory_space<vmem>>, vector<1x1x32xf32>
    %68 = vector.shape_cast %67 : vector<1x1x32xf32> to vector<1x32xf32>
    %69 = vector.broadcast %68 : vector<1x32xf32> to vector<32x32xf32>
    %70 = arith.addf %66, %69 : vector<32x32xf32>
    %cst_31 = arith.constant 0.000000e+00 : f32
    %71 = vector.broadcast %cst_31 : f32 to vector<32x32xf32>
    %72 = arith.maximumf %70, %71 : vector<32x32xf32>
    %73 = arith.truncf %72 : vector<32x32xf32> to vector<32x32xbf16>
    %c1 = arith.constant 1 : index
    %c0_32 = arith.constant 0 : index
    %c0_33 = arith.constant 0 : index
    %74 = vector.load %arg6[%c1, %c0_32, %c0_33] : memref<2x32x32xbf16, #tpu.memory_space<vmem>>, vector<1x32x32xbf16>
    %75 = vector.shape_cast %74 : vector<1x32x32xbf16> to vector<32x32xbf16>
    %cst_34 = arith.constant dense<0.000000e+00> : vector<32x32xf32>
    %76 = tpu.matmul %73, %75, %cst_34 {dimension_numbers = #tpu.dot_dimension_numbers<[1], [0], [0], [1], [0, 0, 1, 1], [], []>} : vector<32x32xbf16>, vector<32x32xbf16>, vector<32x32xf32> -> vector<32x32xf32>
    %c1_35 = arith.constant 1 : index
    %c0_36 = arith.constant 0 : index
    %c0_37 = arith.constant 0 : index
    %77 = vector.load %arg7[%c1_35, %c0_36, %c0_37] : memref<2x1x32xf32, #tpu.memory_space<vmem>>, vector<1x1x32xf32>
    %78 = vector.shape_cast %77 : vector<1x1x32xf32> to vector<1x32xf32>
    %79 = vector.broadcast %78 : vector<1x32xf32> to vector<32x32xf32>
    %80 = arith.addf %76, %79 : vector<32x32xf32>
    %81 = arith.addf %80, %51 : vector<32x32xf32>
    %82 = vector.shape_cast %81 : vector<32x32xf32> to vector<2x16x32xf32>
    %c0_38 = arith.constant 0 : index
    %c0_39 = arith.constant 0 : index
    %c0_40 = arith.constant 0 : index
    %83 = vector.load %arg12[%c0_38, %c0_39, %c0_40] : memref<2x16x32xf32, #tpu.memory_space<vmem>>, vector<2x16x32xf32>
    tpu.vector_store %arg12[%c0_38, %c0_39, %c0_40], %82 {strides = array<i32>} : memref<2x16x32xf32, #tpu.memory_space<vmem>>, vector<2x16x32xf32>,
    %84 = arith.extf %0 : vector<2x16x32xbf16> to vector<2x16x32xf32>
    %cst_41 = arith.constant dense<0.000000e+00> : vector<2x32xf32>
    %85 = vector.multi_reduction <add>, %84, %cst_41 [1] : vector<2x16x32xf32> to vector<2x32xf32>
    %cst_42 = arith.constant 1.600000e+01 : f32
    %86 = vector.broadcast %cst_42 : f32 to vector<2x32xf32>
    %87 = arith.divf %85, %86 : vector<2x32xf32>
    %88 = arith.truncf %87 : vector<2x32xf32> to vector<2x32xbf16>
    %c0_43 = arith.constant 0 : index
    %c0_44 = arith.constant 0 : index
    %89 = vector.load %arg8[%c0_43, %c0_44] : memref<32x32xbf16, #tpu.memory_space<vmem>>, vector<32x32xbf16>
    %cst_45 = arith.constant dense<0.000000e+00> : vector<2x32xf32>
    %90 = tpu.matmul %88, %89, %cst_45 {dimension_numbers = #tpu.dot_dimension_numbers<[1], [0], [0], [1], [0, 0, 1, 1], [], []>} : vector<2x32xbf16>, vector<32x32xbf16>, vector<2x32xf32> -> vector<2x32xf32>
    %c0_46 = arith.constant 0 : index
    %c0_47 = arith.constant 0 : index
    %91 = vector.load %arg9[%c0_46, %c0_47] : memref<1x32xf32, #tpu.memory_space<vmem>>, vector<1x32xf32>
    %92 = vector.broadcast %91 : vector<1x32xf32> to vector<2x32xf32>
    %93 = arith.addf %90, %92 : vector<2x32xf32>
    %cst_48 = arith.constant 0.000000e+00 : f32
    %94 = vector.broadcast %cst_48 : f32 to vector<2x32xf32>
    %95 = arith.maximumf %93, %94 : vector<2x32xf32>
    %96 = arith.truncf %95 : vector<2x32xf32> to vector<2x32xbf16>
    %c0_49 = arith.constant 0 : index
    %c0_50 = arith.constant 0 : index
    %97 = vector.load %arg10[%c0_49, %c0_50] : memref<32x4xbf16, #tpu.memory_space<vmem>>, vector<32x4xbf16>
    %cst_51 = arith.constant dense<0.000000e+00> : vector<2x4xf32>
    %98 = tpu.matmul %96, %97, %cst_51 {dimension_numbers = #tpu.dot_dimension_numbers<[1], [0], [0], [1], [0, 0, 1, 1], [], []>} : vector<2x32xbf16>, vector<32x4xbf16>, vector<2x4xf32> -> vector<2x4xf32>
    %c0_52 = arith.constant 0 : index
    %c0_53 = arith.constant 0 : index
    %99 = vector.load %arg11[%c0_52, %c0_53] : memref<1x4xf32, #tpu.memory_space<vmem>>, vector<1x4xf32>
    %100 = vector.broadcast %99 : vector<1x4xf32> to vector<2x4xf32>
    %101 = arith.addf %98, %100 : vector<2x4xf32>
    %cst_54 = arith.constant 0.000000e+00 : f32
    %102 = vector.broadcast %cst_54 : f32 to vector<2x4xf32>
    %103 = arith.subf %102, %101 : vector<2x4xf32>
    %104 = math.exp %103 : vector<2x4xf32>
    %cst_55 = arith.constant 1.000000e+00 : f32
    %105 = vector.broadcast %cst_55 : f32 to vector<2x4xf32>
    %106 = arith.addf %105, %104 : vector<2x4xf32>
    %cst_56 = arith.constant 1.000000e+00 : f32
    %107 = vector.broadcast %cst_56 : f32 to vector<2x4xf32>
    %108 = arith.divf %107, %106 : vector<2x4xf32>
    %c0_57 = arith.constant 0 : index
    %c0_58 = arith.constant 0 : index
    %109 = vector.load %arg13[%c0_57, %c0_58] : memref<2x4xf32, #tpu.memory_space<vmem>>, vector<2x4xf32>
    tpu.vector_store %arg13[%c0_57, %c0_58], %108 {strides = array<i32>} : memref<2x4xf32, #tpu.memory_space<vmem>>, vector<2x4xf32>,
    return
  }
  func.func @transform_0(%arg0: i32) -> (i32, i32, i32) {
    %c0_i32 = arith.constant 0 : i32
    %c0_i32_0 = arith.constant 0 : i32
    %c0_i32_1 = arith.constant 0 : i32
    return %arg0, %c0_i32, %c0_i32_0 : i32, i32, i32
  }
  func.func @transform_1(%arg0: i32) -> (i32, i32, i32) {
    %c0_i32 = arith.constant 0 : i32
    %c0_i32_0 = arith.constant 0 : i32
    %c0_i32_1 = arith.constant 0 : i32
    return %arg0, %c0_i32, %c0_i32_0 : i32, i32, i32
  }
  func.func @transform_2(%arg0: i32) -> (i32, i32) {
    %c0_i32 = arith.constant 0 : i32
    %c0_i32_0 = arith.constant 0 : i32
    return %arg0, %c0_i32 : i32, i32
  }
  func.func @transform_3(%arg0: i32) -> (i32, i32) {
    %c0_i32 = arith.constant 0 : i32
    %c0_i32_0 = arith.constant 0 : i32
    %c0_i32_1 = arith.constant 0 : i32
    return %c0_i32, %c0_i32_0 : i32, i32
  }
  func.func @transform_4(%arg0: i32) -> (i32, i32) {
    %c0_i32 = arith.constant 0 : i32
    %c0_i32_0 = arith.constant 0 : i32
    %c0_i32_1 = arith.constant 0 : i32
    return %c0_i32, %c0_i32_0 : i32, i32
  }
  func.func @transform_5(%arg0: i32) -> (i32, i32, i32) {
    %c0_i32 = arith.constant 0 : i32
    %c0_i32_0 = arith.constant 0 : i32
    %c0_i32_1 = arith.constant 0 : i32
    %c0_i32_2 = arith.constant 0 : i32
    return %c0_i32, %c0_i32_0, %c0_i32_1 : i32, i32, i32
  }
  func.func @transform_6(%arg0: i32) -> (i32, i32, i32) {
    %c0_i32 = arith.constant 0 : i32
    %c0_i32_0 = arith.constant 0 : i32
    %c0_i32_1 = arith.constant 0 : i32
    %c0_i32_2 = arith.constant 0 : i32
    return %c0_i32, %c0_i32_0, %c0_i32_1 : i32, i32, i32
  }
  func.func @transform_7(%arg0: i32) -> (i32, i32) {
    %c0_i32 = arith.constant 0 : i32
    %c0_i32_0 = arith.constant 0 : i32
    %c0_i32_1 = arith.constant 0 : i32
    return %c0_i32, %c0_i32_0 : i32, i32
  }
  func.func @transform_8(%arg0: i32) -> (i32, i32) {
    %c0_i32 = arith.constant 0 : i32
    %c0_i32_0 = arith.constant 0 : i32
    %c0_i32_1 = arith.constant 0 : i32
    return %c0_i32, %c0_i32_0 : i32, i32
  }
  func.func @transform_9(%arg0: i32) -> (i32, i32) {
    %c0_i32 = arith.constant 0 : i32
    %c0_i32_0 = arith.constant 0 : i32
    %c0_i32_1 = arith.constant 0 : i32
    return %c0_i32, %c0_i32_0 : i32, i32
  }
  func.func @transform_10(%arg0: i32) -> (i32, i32) {
    %c0_i32 = arith.constant 0 : i32
    %c0_i32_0 = arith.constant 0 : i32
    %c0_i32_1 = arith.constant 0 : i32
    return %c0_i32, %c0_i32_0 : i32, i32
  }
  func.func @transform_11(%arg0: i32) -> (i32, i32, i32) {
    %c0_i32 = arith.constant 0 : i32
    %c0_i32_0 = arith.constant 0 : i32
    %c0_i32_1 = arith.constant 0 : i32
    return %arg0, %c0_i32, %c0_i32_0 : i32, i32, i32
  }
  func.func @transform_12(%arg0: i32) -> (i32, i32) {
    %c0_i32 = arith.constant 0 : i32
    %c0_i32_0 = arith.constant 0 : i32
    return %arg0, %c0_i32 : i32, i32
  }
}

</mosaic_0001>

<llo_original>
// kernel: tpu_custom_call.1
$region0: #{tpu_custom_call.1}
  #allocation0 [shape = 'u32[]', space=smem, size = 0x4, offset = 0x4, fixed_abs, tag = 'smem constant byte address 0x4 - core index']
  #allocation1 [shape = 'u32[144,128]{1,0:T(1,128)}', space=vmem, size = 0x12000, scoped, tag = 'internal scratch']
  %s0 = inlined_call_operand.vmem [shape: bf16[2,16,32], index: 0, kind: input, shape index: {}]
  %s1 = inlined_call_operand.vmem [shape: bf16[2,128,32], index: 1, kind: input, shape index: {}]
  %s2 = inlined_call_operand.vmem [shape: s32[2,1], index: 2, kind: input, shape index: {}]
  %s3 = inlined_call_operand.vmem [shape: bf16[32,64], index: 3, kind: input, shape index: {}]
  %s4 = inlined_call_operand.vmem [shape: f32[1,64], index: 4, kind: input, shape index: {}]
  %s5 = inlined_call_operand.vmem [shape: bf16[2,32,32], index: 5, kind: input, shape index: {}]
  %s6 = inlined_call_operand.vmem [shape: f32[2,1,32], index: 6, kind: input, shape index: {}]
  %s7 = inlined_call_operand.vmem [shape: bf16[32,32], index: 7, kind: input, shape index: {}]
  %s8 = inlined_call_operand.vmem [shape: f32[1,32], index: 8, kind: input, shape index: {}]
  %s9 = inlined_call_operand.vmem [shape: bf16[32,4], index: 9, kind: input, shape index: {}]
  %s10 = inlined_call_operand.vmem [shape: f32[1,4], index: 10, kind: input, shape index: {}]
  %s11 = inlined_call_operand.hbm [shape: f32[2,16,32], index: 11, kind: output, shape index: {0}]
  %s12 = inlined_call_operand.hbm [shape: f32[2,4], index: 12, kind: output, shape index: {1}]
  %13 = xla_tuple %s11, %s12
  %s14 = sld [smem:[#allocation0]]
  $region62: #{tpu_custom_call.1} parent=0
    _
  %s16 = ssub.s32 1, %s14
  %s17 = scalar_select 0, %s16, %s14
  $region1: #{tpu_custom_call.1} parent=0
    #allocation2 [shape = 'u8[16384]{0}', space=vmem, size = 0x4000, scoped, tag = 'output window, operand 0, single buffered']
    #allocation3 [shape = 's32[1]{0}', space=sflag, size = 0x4, scoped, tag = 'scoped memory for tpu_custom_call.1']
    #allocation4 [shape = 'u8[1024]{0}', space=vmem, size = 0x400, scoped, tag = 'output window, operand 1, single buffered']
    #allocation5 [shape = 's32[1]{0}', space=sflag, size = 0x4, scoped, tag = 'scoped memory for tpu_custom_call.1']
    %18 = vsyncpa [#allocation3], 0
    %19 = vsyncpa [#allocation5], 0
    // Predicated region
    $region2: #{tpu_custom_call.1} parent=1 // pred_check
      _
    $region3: #{tpu_custom_call.1} parent=1 // pred_check_branch
      %21 = sbr.rel (0) target = $region5
    $region4: #{tpu_custom_call.1} parent=1 // pred_region
      _
    $region5: #{tpu_custom_call.1} parent=1 // pred_fallthru
      _
    // Predicated region
    $region6: #{tpu_custom_call.1} parent=1 // pred_check
      _
    $region7: #{tpu_custom_call.1} parent=1 // pred_check_branch
      %23 = sbr.rel (0) target = $region9
    $region8: #{tpu_custom_call.1} parent=1 // pred_region
      _
    $region9: #{tpu_custom_call.1} parent=1 // pred_fallthru
      _
    // Predicated region
    $region10: #{tpu_custom_call.1} parent=1 // pred_check
      _
    $region11: #{tpu_custom_call.1} parent=1 // pred_check_branch
      %25 = sbr.rel (0) target = $region13
    $region12: #{tpu_custom_call.1} parent=1 // pred_region
      _
    $region13: #{tpu_custom_call.1} parent=1 // pred_fallthru
      _
    // Predicated region
    $region14: #{tpu_custom_call.1} parent=1 // pred_check
      _
    $region15: #{tpu_custom_call.1} parent=1 // pred_check_branch
      %27 = sbr.rel (0) target = $region17
    $region16: #{tpu_custom_call.1} parent=1 // pred_region
      _
    $region17: #{tpu_custom_call.1} parent=1 // pred_fallthru
      _
    // Predicated region
    $region18: #{tpu_custom_call.1} parent=1 // pred_check
      _
    $region19: #{tpu_custom_call.1} parent=1 // pred_check_branch
      %29 = sbr.rel (0) target = $region21
    $region20: #{tpu_custom_call.1} parent=1 // pred_region
      _
    $region21: #{tpu_custom_call.1} parent=1 // pred_fallthru
      _
    // Predicated region
    $region22: #{tpu_custom_call.1} parent=1 // pred_check
      _
    $region23: #{tpu_custom_call.1} parent=1 // pred_check_branch
      %31 = sbr.rel (0) target = $region25
    $region24: #{tpu_custom_call.1} parent=1 // pred_region
      _
    $region25: #{tpu_custom_call.1} parent=1 // pred_fallthru
      _
    // Predicated region
    $region26: #{tpu_custom_call.1} parent=1 // pred_check
      _
    $region27: #{tpu_custom_call.1} parent=1 // pred_check_branch
      %33 = sbr.rel (0) target = $region29
    $region28: #{tpu_custom_call.1} parent=1 // pred_region
      _
    $region29: #{tpu_custom_call.1} parent=1 // pred_fallthru
      _
    // Predicated region
    $region30: #{tpu_custom_call.1} parent=1 // pred_check
      _
    $region31: #{tpu_custom_call.1} parent=1 // pred_check_branch
      %35 = sbr.rel (0) target = $region33
    $region32: #{tpu_custom_call.1} parent=1 // pred_region
      _
    $region33: #{tpu_custom_call.1} parent=1 // pred_fallthru
      _
    // Predicated region
    $region34: #{tpu_custom_call.1} parent=1 // pred_check
      _
    $region35: #{tpu_custom_call.1} parent=1 // pred_check_branch
      %37 = sbr.rel (0) target = $region37
    $region36: #{tpu_custom_call.1} parent=1 // pred_region
      _
    $region37: #{tpu_custom_call.1} parent=1 // pred_fallthru
      _
    // Predicated region
    $region38: #{tpu_custom_call.1} parent=1 // pred_check
      _
    $region39: #{tpu_custom_call.1} parent=1 // pred_check_branch
      %39 = sbr.rel (0) target = $region41
    $region40: #{tpu_custom_call.1} parent=1 // pred_region
      _
    $region41: #{tpu_custom_call.1} parent=1 // pred_fallthru
      _
    // Predicated region
    $region42: #{tpu_custom_call.1} parent=1 // pred_check
      _
    $region43: #{tpu_custom_call.1} parent=1 // pred_check_branch
      %41 = sbr.rel (0) target = $region45
    $region44: #{tpu_custom_call.1} parent=1 // pred_region
      _
    $region45: #{tpu_custom_call.1} parent=1 // pred_fallthru
      _
    %v43 = vld [vmem:[%s0] sm:$0xf]
    %v44 = vld [vmem:[%s0 + $0x4] sm:$0xf]
    %v45 = vld [vmem:[%s0 + $0x8] sm:$0xf]
    %v46 = vld [vmem:[%s0 + $0xc] sm:$0xf]
    %v47 = vld [vmem:[%s1] sm:$0xf]
    %v48 = vld [vmem:[%s1 + $0x4] sm:$0xf]
    %v49 = vld [vmem:[%s1 + $0x8] sm:$0xf]
    %v50 = vld [vmem:[%s1 + $0xc] sm:$0xf]
    %v51 = vld [vmem:[%s1 + $0x10] sm:$0xf]
    %v52 = vld [vmem:[%s1 + $0x14] sm:$0xf]
    %v53 = vld [vmem:[%s1 + $0x18] sm:$0xf]
    %v54 = vld [vmem:[%s1 + $0x1c] sm:$0xf]
    %v55 = vld [vmem:[%s1 + $0x20] sm:$0xf]
    %v56 = vld [vmem:[%s1 + $0x24] sm:$0xf]
    %v57 = vld [vmem:[%s1 + $0x28] sm:$0xf]
    %v58 = vld [vmem:[%s1 + $0x2c] sm:$0xf]
    %v59 = vld [vmem:[%s1 + $0x30] sm:$0xf]
    %v60 = vld [vmem:[%s1 + $0x34] sm:$0xf]
    %v61 = vld [vmem:[%s1 + $0x38] sm:$0xf]
    %v62 = vld [vmem:[%s1 + $0x3c] sm:$0xf]
    %v63 = vld [vmem:[%s1 + $0x40] sm:$0xf]
    %v64 = vld [vmem:[%s1 + $0x44] sm:$0xf]
    %v65 = vld [vmem:[%s1 + $0x48] sm:$0xf]
    %v66 = vld [vmem:[%s1 + $0x4c] sm:$0xf]
    %v67 = vld [vmem:[%s1 + $0x50] sm:$0xf]
    %v68 = vld [vmem:[%s1 + $0x54] sm:$0xf]
    %v69 = vld [vmem:[%s1 + $0x58] sm:$0xf]
    %v70 = vld [vmem:[%s1 + $0x5c] sm:$0xf]
    %v71 = vld [vmem:[%s1 + $0x60] sm:$0xf]
    %v72 = vld [vmem:[%s1 + $0x64] sm:$0xf]
    %v73 = vld [vmem:[%s1 + $0x68] sm:$0xf]
    %v74 = vld [vmem:[%s1 + $0x6c] sm:$0xf]
    %v75 = vld [vmem:[%s1 + $0x70] sm:$0xf]
    %v76 = vld [vmem:[%s1 + $0x74] sm:$0xf]
    %v77 = vld [vmem:[%s1 + $0x78] sm:$0xf]
    %v78 = vld [vmem:[%s1 + $0x7c] sm:$0xf]
    %v79 = vld [vmem:[%s2] sm:$0x3]
    %v82 = vunpack.c.l.b16 %v43
    %v83 = vunpack.c.l.b16 %v44
    %v84 = vpack.c.b16 %v83, %v82
    %v101 = vunpack.c.l.b16 %v47
    %v102 = vunpack.c.l.b16 %v48
    %v103 = vunpack.c.l.b16 %v49
    %v104 = vunpack.c.l.b16 %v50
    %v105 = vunpack.c.l.b16 %v51
    %v106 = vunpack.c.l.b16 %v52
    %v107 = vunpack.c.l.b16 %v53
    %v108 = vunpack.c.l.b16 %v54
    %v109 = vunpack.c.l.b16 %v55
    %v110 = vunpack.c.l.b16 %v56
    %v111 = vunpack.c.l.b16 %v57
    %v112 = vunpack.c.l.b16 %v58
    %v113 = vunpack.c.l.b16 %v59
    %v114 = vunpack.c.l.b16 %v60
    %v115 = vunpack.c.l.b16 %v61
    %v116 = vunpack.c.l.b16 %v62
    %v117 = vpack.c.b16 %v102, %v101
    %v118 = vpack.c.b16 %v104, %v103
    %v119 = vpack.c.b16 %v106, %v105
    %v120 = vpack.c.b16 %v108, %v107
    %v121 = vpack.c.b16 %v110, %v109
    %v122 = vpack.c.b16 %v112, %v111
    %v123 = vpack.c.b16 %v114, %v113
    %v124 = vpack.c.b16 %v116, %v115
    %vm125 = vcmask 261120
    %v127 = vsel %vm125, %v84, 0
    %v130 = vsel %vm125, %v117, 0
    %v133 = vsel %vm125, %v118, 0
    %v136 = vsel %vm125, %v119, 0
    %v139 = vsel %vm125, %v120, 0
    %v142 = vsel %vm125, %v121, 0
    %v145 = vsel %vm125, %v122, 0
    %v148 = vsel %vm125, %v123, 0
    %v151 = vsel %vm125, %v124, 0
    %153 = vmatprep.subr.bf16.mxu0 0
    %154 = vmatpush1.bf16.xpose.msra.mxu0 %v130
    %155 = vmatprep.subr.bf16.mxu0 0
    %156 = vmatpush1.bf16.xpose.msra.mxu0 %v133
    %157 = vmatprep.subr.bf16.mxu0 0
    %158 = vmatpush1.bf16.xpose.msra.mxu0 %v136
    %159 = vmatprep.subr.bf16.mxu0 0
    %160 = vmatpush1.bf16.xpose.msra.mxu0 %v139
    %161 = vmatprep.subr.bf16.mxu0 0
    %162 = vmatpush1.bf16.xpose.msra.mxu0 %v142
    %163 = vmatprep.subr.bf16.mxu0 0
    %164 = vmatpush1.bf16.xpose.msra.mxu0 %v145
    %165 = vmatprep.subr.bf16.mxu0 0
    %166 = vmatpush1.bf16.xpose.msra.mxu0 %v148
    %167 = vmatprep.subr.bf16.mxu0 0
    %168 = vmatpush1.bf16.xpose.msra.mxu0 %v151
    %169 = vmatprep.subr.bf16.mxu0 0
    %170 = vmatpush1.bf16.xpose.msra.mxu0 0
    %171 = vmatprep.subr.bf16.mxu0 0
    %172 = vmatpush1.bf16.xpose.msra.mxu0 0
    %173 = vmatprep.subr.bf16.mxu0 0
    %174 = vmatpush1.bf16.xpose.msra.mxu0 0
    %175 = vmatprep.subr.bf16.mxu0 0
    %176 = vmatpush1.bf16.xpose.msra.mxu0 0
    %177 = vmatprep.subr.bf16.mxu0 0
    %178 = vmatpush1.bf16.xpose.msra.mxu0 0
    %179 = vmatprep.subr.bf16.mxu0 0
    %180 = vmatpush1.bf16.xpose.msra.mxu0 0
    %181 = vmatprep.subr.bf16.mxu0 0
    %182 = vmatpush1.bf16.xpose.msra.mxu0 0
    %183 = vmatprep.subr.bf16.mxu0 0
    %184 = vmatpush1.bf16.xpose.msra.mxu0 0
    %185 = vmatprep.mubr.bf16.mxu0 0
    %186 = vmatmul.mubr.bf16.gmra.mrb[0].mxu0 %v127
    %v187 = vpop.f32.mrb[0].mxu0
    %v188 = vadd.f32 0.0, %v187
    %v189 = vpop.f32.mrb[0].mxu0
    %v190 = vpop.f32.mrb[0].mxu0
    %v191 = vadd.f32 0.0, %v190
    %v192 = vpop.f32.mrb[0].mxu0
    %193 = vdwg.mxu0
    %v196 = vunpack.c.l.b16 %v45
    %v197 = vunpack.c.l.b16 %v46
    %v198 = vpack.c.b16 %v197, %v196
    %v215 = vunpack.c.l.b16 %v63
    %v216 = vunpack.c.l.b16 %v64
    %v217 = vunpack.c.l.b16 %v65
    %v218 = vunpack.c.l.b16 %v66
    %v219 = vunpack.c.l.b16 %v67
    %v220 = vunpack.c.l.b16 %v68
    %v221 = vunpack.c.l.b16 %v69
    %v222 = vunpack.c.l.b16 %v70
    %v223 = vunpack.c.l.b16 %v71
    %v224 = vunpack.c.l.b16 %v72
    %v225 = vunpack.c.l.b16 %v73
    %v226 = vunpack.c.l.b16 %v74
    %v227 = vunpack.c.l.b16 %v75
    %v228 = vunpack.c.l.b16 %v76
    %v229 = vunpack.c.l.b16 %v77
    %v230 = vunpack.c.l.b16 %v78
    %v231 = vpack.c.b16 %v216, %v215
    %v232 = vpack.c.b16 %v218, %v217
    %v233 = vpack.c.b16 %v220, %v219
    %v234 = vpack.c.b16 %v222, %v221
    %v235 = vpack.c.b16 %v224, %v223
    %v236 = vpack.c.b16 %v226, %v225
    %v237 = vpack.c.b16 %v228, %v227
    %v238 = vpack.c.b16 %v230, %v229
    %v240 = vsel %vm125, %v198, 0
    %v243 = vsel %vm125, %v231, 0
    %v246 = vsel %vm125, %v232, 0
    %v249 = vsel %vm125, %v233, 0
    %v252 = vsel %vm125, %v234, 0
    %v255 = vsel %vm125, %v235, 0
    %v258 = vsel %vm125, %v236, 0
    %v261 = vsel %vm125, %v237, 0
    %v264 = vsel %vm125, %v238, 0
    %266 = vmatprep.subr.bf16.mxu0 0
    %267 = vmatpush1.bf16.xpose.msra.mxu0 %v243
    %268 = vmatprep.subr.bf16.mxu0 0
    %269 = vmatpush1.bf16.xpose.msra.mxu0 %v246
    %270 = vmatprep.subr.bf16.mxu0 0
    %271 = vmatpush1.bf16.xpose.msra.mxu0 %v249
    %272 = vmatprep.subr.bf16.mxu0 0
    %273 = vmatpush1.bf16.xpose.msra.mxu0 %v252
    %274 = vmatprep.subr.bf16.mxu0 0
    %275 = vmatpush1.bf16.xpose.msra.mxu0 %v255
    %276 = vmatprep.subr.bf16.mxu0 0
    %277 = vmatpush1.bf16.xpose.msra.mxu0 %v258
    %278 = vmatprep.subr.bf16.mxu0 0
    %279 = vmatpush1.bf16.xpose.msra.mxu0 %v261
    %280 = vmatprep.subr.bf16.mxu0 0
    %281 = vmatpush1.bf16.xpose.msra.mxu0 %v264
    %282 = vmatprep.subr.bf16.mxu0 0
    %283 = vmatpush1.bf16.xpose.msra.mxu0 0
    %284 = vmatprep.subr.bf16.mxu0 0
    %285 = vmatpush1.bf16.xpose.msra.mxu0 0
    %286 = vmatprep.subr.bf16.mxu0 0
    %287 = vmatpush1.bf16.xpose.msra.mxu0 0
    %288 = vmatprep.subr.bf16.mxu0 0
    %289 = vmatpush1.bf16.xpose.msra.mxu0 0
    %290 = vmatprep.subr.bf16.mxu0 0
    %291 = vmatpush1.bf16.xpose.msra.mxu0 0
    %292 = vmatprep.subr.bf16.mxu0 0
    %293 = vmatpush1.bf16.xpose.msra.mxu0 0
    %294 = vmatprep.subr.bf16.mxu0 0
    %295 = vmatpush1.bf16.xpose.msra.mxu0 0
    %296 = vmatprep.subr.bf16.mxu0 0
    %297 = vmatpush1.bf16.xpose.msra.mxu0 0
    %298 = vmatprep.mubr.bf16.mxu0 0
    %299 = vmatmul.mubr.bf16.gmra.mrb[0].mxu0 %v240
    %v300 = vpop.f32.mrb[0].mxu0
    %v301 = vadd.f32 0.0, %v300
    %v302 = vpop.f32.mrb[0].mxu0
    %v303 = vpop.f32.mrb[0].mxu0
    %v304 = vadd.f32 0.0, %v303
    %v305 = vpop.f32.mrb[0].mxu0
    %306 = vdwg.mxu0
    %vm307 = vcmp.gt.f32.partialorder %v188, 0.0
    %vm308 = vcmp.gt.f32.partialorder %v191, 0.0
    %vm309 = vcmp.gt.f32.partialorder %v301, 0.0
    %vm310 = vcmp.gt.f32.partialorder %v304, 0.0
    %v311 = vmul.f32 %v188, 0.1
    %v312 = vmul.f32 %v191, 0.1
    %v313 = vmul.f32 %v301, 0.1
    %v314 = vmul.f32 %v304, 0.1
    %v315 = vsel %vm307, %v188, %v311
    %v316 = vsel %vm308, %v191, %v312
    %v317 = vsel %vm309, %v301, %v313
    %v318 = vsel %vm310, %v304, %v314
    %v319 = vlaneseq
    %v320 = vand.u32 %v319, 127
    %v322 = vunpack.c.l.s4 1966171168
    %v323 = vunpack.c.0.s8 %v322
    %v324 = vlaneseq
    %v325 = vshrl.u32 %v324, 7
    %v326 = vsub.s32 %v323, %v325
    %v327 = vrot.slane %v79, %v326
    %v328 = vcombine.high %v327, %v327
    %v330 = vunpack.c.l.s4 1966171168
    %v331 = vunpack.c.0.s8 %v330
    %v332 = vlaneseq
    %v333 = vshrl.u32 %v332, 7
    %v334 = vsub.s32 %v331, %v333
    %v335 = vrot.slane %v327, %v334
    %v337 = vunpack.c.l.s4 1966171168
    %v338 = vunpack.c.0.s8 %v337
    %v339 = vlaneseq
    %v340 = vshrl.u32 %v339, 7
    %v341 = vsub.s32 %v338, %v340
    %v342 = vrot.slane %v328, %v341
    %343 = vset.pattern.permute.xlu0 0
    %344 = vperm.xlu0 %343, %v335
    %v345 = vpop.permute.xlu0 %344
    %v346 = vlaneseq
    %v347 = vshrl.u32 %v346, 7
    %v348 = vsub.s32 0, %v347
    %v349 = vrot.slane %v345, %v348
    %350 = vset.pattern.permute.xlu0 0
    %351 = vperm.xlu0 %350, %v342
    %v352 = vpop.permute.xlu0 %351
    %v353 = vlaneseq
    %v354 = vshrl.u32 %v353, 7
    %v355 = vsub.s32 0, %v354
    %v356 = vrot.slane %v352, %v355
    %vm357 = vcmp.lt.s32.totalorder %v320, %v349
    %vm358 = vcmp.lt.s32.totalorder %v320, %v356
    %v359 = vsel %vm357, 1, 0
    %v360 = vsel %vm358, 1, 0
    %vm361 = vcmp.eq.s32.totalorder %v359, 1
    %vm362 = vcmp.eq.s32.totalorder %v360, 1
    %v363 = vsel %vm361, %v315, 0.0
    %v364 = vsel %vm361, %v316, 0.0
    %v365 = vsel %vm362, %v317, 0.0
    %v366 = vsel %vm362, %v318, 0.0
    %v367 = vmul.f32 %v363, %v363
    %v368 = vmul.f32 %v364, %v364
    %v369 = vmul.f32 %v365, %v365
    %v370 = vmul.f32 %v366, %v366
    %371 = vadd.xlane.f32.xlu0 %v367
    %v372 = vpop.xlane.xlu0 %371
    %373 = vadd.xlane.f32.xlu0 %v368
    %v374 = vpop.xlane.xlu0 %373
    %375 = vadd.xlane.f32.xlu0 %v369
    %v376 = vpop.xlane.xlu0 %375
    %377 = vadd.xlane.f32.xlu0 %v370
    %v378 = vpop.xlane.xlu0 %377
    %v379 = vadd.f32 %v372, 1e-16
    %v380 = vadd.f32 %v374, 1e-16
    %v381 = vadd.f32 %v376, 1e-16
    %v382 = vadd.f32 %v378, 1e-16
    %v383 = vrsqrt.pop %v379
    %v384 = vrsqrt.pop %v380
    %v385 = vrsqrt.pop %v381
    %v386 = vrsqrt.pop %v382
    %v387 = vmul.f32 %v363, %v383
    %v388 = vmul.f32 %v364, %v384
    %v389 = vmul.f32 %v365, %v385
    %v390 = vmul.f32 %v366, %v386
    %v391 = vmul.f32 %v387, 4.0
    %v392 = vmul.f32 %v388, 4.0
    %v393 = vmul.f32 %v389, 4.0
    %v394 = vmul.f32 %v390, 4.0
    %v395 = vsel %vm361, %v391, -1e+30
    %v396 = vsel %vm361, %v392, -1e+30
    %v397 = vsel %vm362, %v393, -1e+30
    %v398 = vsel %vm362, %v394, -1e+30
    %399 = vmax.xlane.f32.xlu0 %v395
    %v400 = vpop.xlane.xlu0 %399
    %401 = vmax.xlane.f32.xlu0 %v396
    %v402 = vpop.xlane.xlu0 %401
    %403 = vmax.xlane.f32.xlu0 %v397
    %v404 = vpop.xlane.xlu0 %403
    %405 = vmax.xlane.f32.xlu0 %v398
    %v406 = vpop.xlane.xlu0 %405
    %v407 = vsub.f32 %v395, %v400
    %v408 = vsub.f32 %v396, %v402
    %v409 = vsub.f32 %v397, %v404
    %v410 = vsub.f32 %v398, %v406
    %v411 = vmul.f32 %v407, 1.442695
    %v412 = vpow.pop %v411
    %v413 = vmul.f32 %v408, 1.442695
    %v414 = vpow.pop %v413
    %v415 = vmul.f32 %v409, 1.442695
    %v416 = vpow.pop %v415
    %v417 = vmul.f32 %v410, 1.442695
    %v418 = vpow.pop %v417
    %v419 = vsel %vm361, %v412, 0.0
    %v420 = vsel %vm361, %v414, 0.0
    %v421 = vsel %vm362, %v416, 0.0
    %v422 = vsel %vm362, %v418, 0.0
    %423 = vadd.xlane.f32.xlu0 %v419
    %v424 = vpop.xlane.xlu0 %423
    %425 = vadd.xlane.f32.xlu0 %v420
    %v426 = vpop.xlane.xlu0 %425
    %427 = vadd.xlane.f32.xlu0 %v421
    %v428 = vpop.xlane.xlu0 %427
    %429 = vadd.xlane.f32.xlu0 %v422
    %v430 = vpop.xlane.xlu0 %429
    %v431 = vadd.f32 %v424, 1e-08
    %v432 = vadd.f32 %v426, 1e-08
    %v433 = vadd.f32 %v428, 1e-08
    %v434 = vadd.f32 %v430, 1e-08
    %v435 = vrcp.pop %v431
    %v436 = vrcp.pop %v432
    %v437 = vrcp.pop %v433
    %v438 = vrcp.pop %v434
    %v439 = vmul.f32 %v419, %v435
    %v440 = vmul.f32 %v420, %v436
    %v441 = vmul.f32 %v421, %v437
    %v442 = vmul.f32 %v422, %v438
    %v443 = vpack.c.bf16 %v440, %v439
    %v444 = vpack.c.bf16 %v442, %v441
    %453 = vmatprep.subr.bf16.mxu0 0
    %454 = vmatpush1.bf16.msra.mxu0 %v117
    %455 = vmatprep.subr.bf16.mxu0 0
    %456 = vmatpush1.bf16.msra.mxu0 %v118
    %457 = vmatprep.subr.bf16.mxu0 0
    %458 = vmatpush1.bf16.msra.mxu0 %v119
    %459 = vmatprep.subr.bf16.mxu0 0
    %460 = vmatpush1.bf16.msra.mxu0 %v120
    %461 = vmatprep.subr.bf16.mxu0 0
    %462 = vmatpush1.bf16.msra.mxu0 %v121
    %463 = vmatprep.subr.bf16.mxu0 0
    %464 = vmatpush1.bf16.msra.mxu0 %v122
    %465 = vmatprep.subr.bf16.mxu0 0
    %466 = vmatpush1.bf16.msra.mxu0 %v123
    %467 = vmatprep.subr.bf16.mxu0 0
    %468 = vmatpush1.bf16.msra.mxu0 %v124
    %469 = vmatprep.subr.bf16.mxu0 0
    %470 = vmatpush1.bf16.msra.mxu0 0
    %471 = vmatprep.subr.bf16.mxu0 0
    %472 = vmatpush1.bf16.msra.mxu0 0
    %473 = vmatprep.subr.bf16.mxu0 0
    %474 = vmatpush1.bf16.msra.mxu0 0
    %475 = vmatprep.subr.bf16.mxu0 0
    %476 = vmatpush1.bf16.msra.mxu0 0
    %477 = vmatprep.subr.bf16.mxu0 0
    %478 = vmatpush1.bf16.msra.mxu0 0
    %479 = vmatprep.subr.bf16.mxu0 0
    %480 = vmatpush1.bf16.msra.mxu0 0
    %481 = vmatprep.subr.bf16.mxu0 0
    %482 = vmatpush1.bf16.msra.mxu0 0
    %483 = vmatprep.subr.bf16.mxu0 0
    %484 = vmatpush1.bf16.msra.mxu0 0
    %485 = vmatprep.mubr.bf16.mxu0 0
    %486 = vmatmul.mubr.bf16.gmra.mrb[0].mxu0 %v443
    %v487 = vpop.f32.mrb[0].mxu0
    %v488 = vadd.f32 0.0, %v487
    %v489 = vpop.f32.mrb[0].mxu0
    %v490 = vpop.f32.mrb[0].mxu0
    %v491 = vadd.f32 0.0, %v490
    %v492 = vpop.f32.mrb[0].mxu0
    %493 = vdwg.mxu0
    %502 = vmatprep.subr.bf16.mxu0 0
    %503 = vmatpush1.bf16.msra.mxu0 %v231
    %504 = vmatprep.subr.bf16.mxu0 0
    %505 = vmatpush1.bf16.msra.mxu0 %v232
    %506 = vmatprep.subr.bf16.mxu0 0
    %507 = vmatpush1.bf16.msra.mxu0 %v233
    %508 = vmatprep.subr.bf16.mxu0 0
    %509 = vmatpush1.bf16.msra.mxu0 %v234
    %510 = vmatprep.subr.bf16.mxu0 0
    %511 = vmatpush1.bf16.msra.mxu0 %v235
    %512 = vmatprep.subr.bf16.mxu0 0
    %513 = vmatpush1.bf16.msra.mxu0 %v236
    %514 = vmatprep.subr.bf16.mxu0 0
    %515 = vmatpush1.bf16.msra.mxu0 %v237
    %516 = vmatprep.subr.bf16.mxu0 0
    %517 = vmatpush1.bf16.msra.mxu0 %v238
    %518 = vmatprep.subr.bf16.mxu0 0
    %519 = vmatpush1.bf16.msra.mxu0 0
    %520 = vmatprep.subr.bf16.mxu0 0
    %521 = vmatpush1.bf16.msra.mxu0 0
    %522 = vmatprep.subr.bf16.mxu0 0
    %523 = vmatpush1.bf16.msra.mxu0 0
    %524 = vmatprep.subr.bf16.mxu0 0
    %525 = vmatpush1.bf16.msra.mxu0 0
    %526 = vmatprep.subr.bf16.mxu0 0
    %527 = vmatpush1.bf16.msra.mxu0 0
    %528 = vmatprep.subr.bf16.mxu0 0
    %529 = vmatpush1.bf16.msra.mxu0 0
    %530 = vmatprep.subr.bf16.mxu0 0
    %531 = vmatpush1.bf16.msra.mxu0 0
    %532 = vmatprep.subr.bf16.mxu0 0
    %533 = vmatpush1.bf16.msra.mxu0 0
    %534 = vmatprep.mubr.bf16.mxu0 0
    %535 = vmatmul.mubr.bf16.gmra.mrb[0].mxu0 %v444
    %v536 = vpop.f32.mrb[0].mxu0
    %v537 = vadd.f32 0.0, %v536
    %v538 = vpop.f32.mrb[0].mxu0
    %v539 = vpop.f32.mrb[0].mxu0
    %v540 = vadd.f32 0.0, %v539
    %v541 = vpop.f32.mrb[0].mxu0
    %542 = vdwg.mxu0
    %v543 = vunpack.c.l.bf16 %v43
    %v544 = vunpack.c.l.bf16 %v44
    %v545 = vunpack.c.l.bf16 %v45
    %v546 = vunpack.c.l.bf16 %v46
    %v547 = vpack.c.bf16 %v491, %v488
    %v548 = vpack.c.bf16 %v540, %v537
    %v549 = vld [vmem:[%s3] sm:$0xf]
    %v550 = vld [vmem:[%s3 + $0x4] sm:$0xf]
    %v551 = vld [vmem:[%s3 + $0x8] sm:$0xf]
    %v552 = vld [vmem:[%s3 + $0xc] sm:$0xf]
    %v553 = vld [vmem:[%s4] sm:$0x1]
    %v555 = vlaneseq
    %v556 = vshrl.u32 %v555, 7
    %v557 = vsub.s32 0, %v556
    %v558 = vrot.slane %v553, %v557
    %v564 = vunpack.c.l.b16 %v549
    %v565 = vunpack.c.l.b16 %v550
    %v566 = vunpack.c.l.b16 %v551
    %v567 = vunpack.c.l.b16 %v552
    %v568 = vpack.c.b16 %v565, %v564
    %v569 = vpack.c.b16 %v567, %v566
    %v573 = vsel %vm125, %v547, 0
    %v576 = vsel %vm125, %v548, 0
    %578 = vmatprep.subr.bf16.mxu0 0
    %579 = vmatpush1.bf16.msra.mxu0 %v568
    %580 = vmatprep.subr.bf16.mxu0 0
    %581 = vmatpush1.bf16.msra.mxu0 %v569
    %582 = vmatprep.subr.bf16.mxu0 0
    %583 = vmatpush1.bf16.msra.mxu0 0
    %584 = vmatprep.subr.bf16.mxu0 0
    %585 = vmatpush1.bf16.msra.mxu0 0
    %586 = vmatprep.subr.bf16.mxu0 0
    %587 = vmatpush1.bf16.msra.mxu0 0
    %588 = vmatprep.subr.bf16.mxu0 0
    %589 = vmatpush1.bf16.msra.mxu0 0
    %590 = vmatprep.subr.bf16.mxu0 0
    %591 = vmatpush1.bf16.msra.mxu0 0
    %592 = vmatprep.subr.bf16.mxu0 0
    %593 = vmatpush1.bf16.msra.mxu0 0
    %594 = vmatprep.subr.bf16.mxu0 0
    %595 = vmatpush1.bf16.msra.mxu0 0
    %596 = vmatprep.subr.bf16.mxu0 0
    %597 = vmatpush1.bf16.msra.mxu0 0
    %598 = vmatprep.subr.bf16.mxu0 0
    %599 = vmatpush1.bf16.msra.mxu0 0
    %600 = vmatprep.subr.bf16.mxu0 0
    %601 = vmatpush1.bf16.msra.mxu0 0
    %602 = vmatprep.subr.bf16.mxu0 0
    %603 = vmatpush1.bf16.msra.mxu0 0
    %604 = vmatprep.subr.bf16.mxu0 0
    %605 = vmatpush1.bf16.msra.mxu0 0
    %606 = vmatprep.subr.bf16.mxu0 0
    %607 = vmatpush1.bf16.msra.mxu0 0
    %608 = vmatprep.subr.bf16.mxu0 0
    %609 = vmatpush1.bf16.msra.mxu0 0
    %610 = vmatprep.mubr.bf16.mxu0 0
    %611 = vmatmul.mubr.bf16.gmra.mrb[0].mxu0 %v573
    %v612 = vpop.f32.mrb[0].mxu0
    %v613 = vadd.f32 %v558, %v612
    %v614 = vpop.f32.mrb[0].mxu0
    %v615 = vpop.f32.mrb[0].mxu0
    %v616 = vadd.f32 %v558, %v615
    %v617 = vpop.f32.mrb[0].mxu0
    %618 = vmatprep.mubr.bf16.mxu0 0
    %619 = vmatmul.mubr.bf16.gmra.mrb[0].mxu0 %v576
    %v620 = vpop.f32.mrb[0].mxu0
    %v621 = vadd.f32 %v558, %v620
    %v622 = vpop.f32.mrb[0].mxu0
    %v623 = vpop.f32.mrb[0].mxu0
    %v624 = vadd.f32 %v558, %v623
    %v625 = vpop.f32.mrb[0].mxu0
    %626 = vdwg.mxu0
    %v627 = vtanh.pop %v613
    %v628 = vtanh.pop %v616
    %v629 = vtanh.pop %v621
    %v630 = vtanh.pop %v624
    %v631 = vmul.f32 %v543, %v627
    %v632 = vmul.f32 %v544, %v628
    %v633 = vmul.f32 %v545, %v629
    %v634 = vmul.f32 %v546, %v630
    %639 = vrot.lane.b32.xlu0 %v613, 96
    %v640 = vpop.permute.xlu0 %639
    %641 = vrot.lane.b32.xlu0 %v616, 96
    %v642 = vpop.permute.xlu0 %641
    %643 = vrot.lane.b32.xlu0 %v621, 96
    %v644 = vpop.permute.xlu0 %643
    %645 = vrot.lane.b32.xlu0 %v624, 96
    %v646 = vpop.permute.xlu0 %645
    %v651 = vadd.f32 %v631, %v640
    %v652 = vadd.f32 %v632, %v642
    %v653 = vadd.f32 %v633, %v644
    %v654 = vadd.f32 %v634, %v646
    %v655 = vpack.c.bf16 %v652, %v651
    %v656 = vpack.c.bf16 %v654, %v653
    %v657 = vld [vmem:[%s5] sm:$0xf]
    %v658 = vld [vmem:[%s5 + $0x4] sm:$0xf]
    %v659 = vld [vmem:[%s5 + $0x8] sm:$0xf]
    %v660 = vld [vmem:[%s5 + $0xc] sm:$0xf]
    %v661 = vld [vmem:[%s6] sm:$0x1]
    %v663 = vlaneseq
    %v664 = vshrl.u32 %v663, 7
    %v665 = vsub.s32 0, %v664
    %v666 = vrot.slane %v661, %v665
    %v672 = vunpack.c.l.b16 %v657
    %v673 = vunpack.c.l.b16 %v658
    %v674 = vunpack.c.l.b16 %v659
    %v675 = vunpack.c.l.b16 %v660
    %v676 = vpack.c.b16 %v673, %v672
    %v677 = vpack.c.b16 %v675, %v674
    %v681 = vsel %vm125, %v655, 0
    %v684 = vsel %vm125, %v656, 0
    %686 = vmatprep.subr.bf16.mxu0 0
    %687 = vmatpush1.bf16.msra.mxu0 %v676
    %688 = vmatprep.subr.bf16.mxu0 0
    %689 = vmatpush1.bf16.msra.mxu0 %v677
    %690 = vmatprep.subr.bf16.mxu0 0
    %691 = vmatpush1.bf16.msra.mxu0 0
    %692 = vmatprep.subr.bf16.mxu0 0
    %693 = vmatpush1.bf16.msra.mxu0 0
    %694 = vmatprep.subr.bf16.mxu0 0
    %695 = vmatpush1.bf16.msra.mxu0 0
    %696 = vmatprep.subr.bf16.mxu0 0
    %697 = vmatpush1.bf16.msra.mxu0 0
    %698 = vmatprep.subr.bf16.mxu0 0
    %699 = vmatpush1.bf16.msra.mxu0 0
    %700 = vmatprep.subr.bf16.mxu0 0
    %701 = vmatpush1.bf16.msra.mxu0 0
    %702 = vmatprep.subr.bf16.mxu0 0
    %703 = vmatpush1.bf16.msra.mxu0 0
    %704 = vmatprep.subr.bf16.mxu0 0
    %705 = vmatpush1.bf16.msra.mxu0 0
    %706 = vmatprep.subr.bf16.mxu0 0
    %707 = vmatpush1.bf16.msra.mxu0 0
    %708 = vmatprep.subr.bf16.mxu0 0
    %709 = vmatpush1.bf16.msra.mxu0 0
    %710 = vmatprep.subr.bf16.mxu0 0
    %711 = vmatpush1.bf16.msra.mxu0 0
    %712 = vmatprep.subr.bf16.mxu0 0
    %713 = vmatpush1.bf16.msra.mxu0 0
    %714 = vmatprep.subr.bf16.mxu0 0
    %715 = vmatpush1.bf16.msra.mxu0 0
    %716 = vmatprep.subr.bf16.mxu0 0
    %717 = vmatpush1.bf16.msra.mxu0 0
    %718 = vmatprep.mubr.bf16.mxu0 0
    %719 = vmatmul.mubr.bf16.gmra.mrb[0].mxu0 %v681
    %v720 = vpop.f32.mrb[0].mxu0
    %v721 = vadd.f32 %v666, %v720
    %v722 = vpop.f32.mrb[0].mxu0
    %v723 = vpop.f32.mrb[0].mxu0
    %v724 = vadd.f32 %v666, %v723
    %v725 = vpop.f32.mrb[0].mxu0
    %726 = vmatprep.mubr.bf16.mxu0 0
    %727 = vmatmul.mubr.bf16.gmra.mrb[0].mxu0 %v684
    %v728 = vpop.f32.mrb[0].mxu0
    %v729 = vadd.f32 %v666, %v728
    %v730 = vpop.f32.mrb[0].mxu0
    %v731 = vpop.f32.mrb[0].mxu0
    %v732 = vadd.f32 %v666, %v731
    %v733 = vpop.f32.mrb[0].mxu0
    %734 = vdwg.mxu0
    %v735 = vmax.f32 %v721, 0.0
    %v736 = vmax.f32 %v724, 0.0
    %v737 = vmax.f32 %v729, 0.0
    %v738 = vmax.f32 %v732, 0.0
    %v739 = vpack.c.bf16 %v736, %v735
    %v740 = vpack.c.bf16 %v738, %v737
    %s741 = scalar_lea.vmem %s5, 16
    %v742 = vld [vmem:[%s741] sm:$0xf]
    %v743 = vld [vmem:[%s741 + $0x4] sm:$0xf]
    %v744 = vld [vmem:[%s741 + $0x8] sm:$0xf]
    %v745 = vld [vmem:[%s741 + $0xc] sm:$0xf]
    %s746 = scalar_lea.vmem %s6, 1
    %v747 = vld [vmem:[%s746] sm:$0x1]
    %v749 = vlaneseq
    %v750 = vshrl.u32 %v749, 7
    %v751 = vsub.s32 0, %v750
    %v752 = vrot.slane %v747, %v751
    %v758 = vunpack.c.l.b16 %v742
    %v759 = vunpack.c.l.b16 %v743
    %v760 = vunpack.c.l.b16 %v744
    %v761 = vunpack.c.l.b16 %v745
    %v762 = vpack.c.b16 %v759, %v758
    %v763 = vpack.c.b16 %v761, %v760
    %v767 = vsel %vm125, %v739, 0
    %v770 = vsel %vm125, %v740, 0
    %772 = vmatprep.subr.bf16.mxu0 0
    %773 = vmatpush1.bf16.msra.mxu0 %v762
    %774 = vmatprep.subr.bf16.mxu0 0
    %775 = vmatpush1.bf16.msra.mxu0 %v763
    %776 = vmatprep.subr.bf16.mxu0 0
    %777 = vmatpush1.bf16.msra.mxu0 0
    %778 = vmatprep.subr.bf16.mxu0 0
    %779 = vmatpush1.bf16.msra.mxu0 0
    %780 = vmatprep.subr.bf16.mxu0 0
    %781 = vmatpush1.bf16.msra.mxu0 0
    %782 = vmatprep.subr.bf16.mxu0 0
    %783 = vmatpush1.bf16.msra.mxu0 0
    %784 = vmatprep.subr.bf16.mxu0 0
    %785 = vmatpush1.bf16.msra.mxu0 0
    %786 = vmatprep.subr.bf16.mxu0 0
    %787 = vmatpush1.bf16.msra.mxu0 0
    %788 = vmatprep.subr.bf16.mxu0 0
    %789 = vmatpush1.bf16.msra.mxu0 0
    %790 = vmatprep.subr.bf16.mxu0 0
    %791 = vmatpush1.bf16.msra.mxu0 0
    %792 = vmatprep.subr.bf16.mxu0 0
    %793 = vmatpush1.bf16.msra.mxu0 0
    %794 = vmatprep.subr.bf16.mxu0 0
    %795 = vmatpush1.bf16.msra.mxu0 0
    %796 = vmatprep.subr.bf16.mxu0 0
    %797 = vmatpush1.bf16.msra.mxu0 0
    %798 = vmatprep.subr.bf16.mxu0 0
    %799 = vmatpush1.bf16.msra.mxu0 0
    %800 = vmatprep.subr.bf16.mxu0 0
    %801 = vmatpush1.bf16.msra.mxu0 0
    %802 = vmatprep.subr.bf16.mxu0 0
    %803 = vmatpush1.bf16.msra.mxu0 0
    %804 = vmatprep.mubr.bf16.mxu0 0
    %805 = vmatmul.mubr.bf16.gmra.mrb[0].mxu0 %v767
    %v806 = vpop.f32.mrb[0].mxu0
    %v807 = vadd.f32 %v752, %v806
    %v808 = vpop.f32.mrb[0].mxu0
    %v809 = vpop.f32.mrb[0].mxu0
    %v810 = vadd.f32 %v752, %v809
    %v811 = vpop.f32.mrb[0].mxu0
    %812 = vmatprep.mubr.bf16.mxu0 0
    %813 = vmatmul.mubr.bf16.gmra.mrb[0].mxu0 %v770
    %v814 = vpop.f32.mrb[0].mxu0
    %v815 = vadd.f32 %v752, %v814
    %v816 = vpop.f32.mrb[0].mxu0
    %v817 = vpop.f32.mrb[0].mxu0
    %v818 = vadd.f32 %v752, %v817
    %v819 = vpop.f32.mrb[0].mxu0
    %820 = vdwg.mxu0
    %v821 = vadd.f32 %v807, %v543
    %v822 = vadd.f32 %v810, %v544
    %v823 = vadd.f32 %v815, %v545
    %v824 = vadd.f32 %v818, %v546
    %825 = vst.msk [vmem:[#allocation2] sm:$0xff] %vm125, %v821
    %826 = vst.msk [vmem:[#allocation2 + $0x8] sm:$0xff] %vm125, %v822
    %827 = vst.msk [vmem:[#allocation2 + $0x10] sm:$0xff] %vm125, %v823
    %828 = vst.msk [vmem:[#allocation2 + $0x18] sm:$0xff] %vm125, %v824
    %v829 = vsel %vm125, %v543, 0.0
    %v830 = vsel %vm125, %v544, 0.0
    %v831 = vadd.f32 %v829, %v830
    %v832 = vrot.slane %v831, 4
    %v833 = vadd.f32 %v831, %v832
    %v834 = vrot.slane %v833, 2
    %v835 = vadd.f32 %v833, %v834
    %v836 = vrot.slane %v835, 1
    %v837 = vadd.f32 %v835, %v836
    %v838 = vsel %vm125, %v545, 0.0
    %v839 = vsel %vm125, %v546, 0.0
    %v840 = vadd.f32 %v838, %v839
    %v841 = vrot.slane %v840, 4
    %v842 = vadd.f32 %v840, %v841
    %v843 = vrot.slane %v842, 2
    %v844 = vadd.f32 %v842, %v843
    %v845 = vrot.slane %v844, 1
    %v846 = vadd.f32 %v844, %v845
    %v847 = vrcp.pop 16.0
    %v848 = vmul.f32 %v837, %v847
    %v849 = vmul.f32 %v846, %v847
    %v850 = vpack.c.bf16 %v848, %v848
    %v851 = vpack.c.bf16 %v849, %v849
    %v852 = vld [vmem:[%s7] sm:$0xf]
    %v853 = vld [vmem:[%s7 + $0x4] sm:$0xf]
    %v854 = vld [vmem:[%s7 + $0x8] sm:$0xf]
    %v855 = vld [vmem:[%s7 + $0xc] sm:$0xf]
    %v856 = vld [vmem:[%s8] sm:$0x1]
    %v858 = vlaneseq
    %v859 = vshrl.u32 %v858, 7
    %v860 = vsub.s32 0, %v859
    %v861 = vrot.slane %v856, %v860
    %v865 = vunpack.c.l.b16 %v850
    %v866 = vunpack.c.l.b16 %v851
    %vm867 = vcmask 1041409
    %v868 = vsel %vm867, %v866, %v865
    %v869 = vpack.c.b16 %v868, %v868
    %v874 = vunpack.c.l.b16 %v852
    %v875 = vunpack.c.l.b16 %v853
    %v876 = vunpack.c.l.b16 %v854
    %v877 = vunpack.c.l.b16 %v855
    %v878 = vpack.c.b16 %v875, %v874
    %v879 = vpack.c.b16 %v877, %v876
    %v883 = vsel %vm125, %v869, 0
    %885 = vmatprep.subr.bf16.mxu0 0
    %886 = vmatpush1.bf16.msra.mxu0 %v878
    %887 = vmatprep.subr.bf16.mxu0 0
    %888 = vmatpush1.bf16.msra.mxu0 %v879
    %889 = vmatprep.subr.bf16.mxu0 0
    %890 = vmatpush1.bf16.msra.mxu0 0
    %891 = vmatprep.subr.bf16.mxu0 0
    %892 = vmatpush1.bf16.msra.mxu0 0
    %893 = vmatprep.subr.bf16.mxu0 0
    %894 = vmatpush1.bf16.msra.mxu0 0
    %895 = vmatprep.subr.bf16.mxu0 0
    %896 = vmatpush1.bf16.msra.mxu0 0
    %897 = vmatprep.subr.bf16.mxu0 0
    %898 = vmatpush1.bf16.msra.mxu0 0
    %899 = vmatprep.subr.bf16.mxu0 0
    %900 = vmatpush1.bf16.msra.mxu0 0
    %901 = vmatprep.subr.bf16.mxu0 0
    %902 = vmatpush1.bf16.msra.mxu0 0
    %903 = vmatprep.subr.bf16.mxu0 0
    %904 = vmatpush1.bf16.msra.mxu0 0
    %905 = vmatprep.subr.bf16.mxu0 0
    %906 = vmatpush1.bf16.msra.mxu0 0
    %907 = vmatprep.subr.bf16.mxu0 0
    %908 = vmatpush1.bf16.msra.mxu0 0
    %909 = vmatprep.subr.bf16.mxu0 0
    %910 = vmatpush1.bf16.msra.mxu0 0
    %911 = vmatprep.subr.bf16.mxu0 0
    %912 = vmatpush1.bf16.msra.mxu0 0
    %913 = vmatprep.subr.bf16.mxu0 0
    %914 = vmatpush1.bf16.msra.mxu0 0
    %915 = vmatprep.subr.bf16.mxu0 0
    %916 = vmatpush1.bf16.msra.mxu0 0
    %917 = vmatprep.mubr.bf16.mxu0 0
    %918 = vmatmul.mubr.bf16.gmra.mrb[0].mxu0 %v883
    %v919 = vpop.f32.mrb[0].mxu0
    %v920 = vadd.f32 %v861, %v919
    %v921 = vpop.f32.mrb[0].mxu0
    %v922 = vpop.f32.mrb[0].mxu0
    %v923 = vpop.f32.mrb[0].mxu0
    %924 = vdwg.mxu0
    %v925 = vmax.f32 %v920, 0.0
    %v926 = vpack.c.bf16 %v925, %v925
    %v927 = vld [vmem:[%s9] sm:$0xf]
    %v928 = vld [vmem:[%s9 + $0x4] sm:$0xf]
    %v929 = vld [vmem:[%s9 + $0x8] sm:$0xf]
    %v930 = vld [vmem:[%s9 + $0xc] sm:$0xf]
    %v931 = vld [vmem:[%s10] sm:$0x1]
    %v933 = vlaneseq
    %v934 = vshrl.u32 %v933, 7
    %v935 = vsub.s32 0, %v934
    %v936 = vrot.slane %v931, %v935
    %v942 = vunpack.c.l.b16 %v927
    %v943 = vunpack.c.l.b16 %v928
    %v944 = vunpack.c.l.b16 %v929
    %v945 = vunpack.c.l.b16 %v930
    %v946 = vpack.c.b16 %v943, %v942
    %v947 = vpack.c.b16 %v945, %v944
    %v951 = vsel %vm125, %v926, 0
    %953 = vmatprep.subr.bf16.mxu0 0
    %954 = vmatpush1.bf16.msra.mxu0 %v946
    %955 = vmatprep.subr.bf16.mxu0 0
    %956 = vmatpush1.bf16.msra.mxu0 %v947
    %957 = vmatprep.subr.bf16.mxu0 0
    %958 = vmatpush1.bf16.msra.mxu0 0
    %959 = vmatprep.subr.bf16.mxu0 0
    %960 = vmatpush1.bf16.msra.mxu0 0
    %961 = vmatprep.subr.bf16.mxu0 0
    %962 = vmatpush1.bf16.msra.mxu0 0
    %963 = vmatprep.subr.bf16.mxu0 0
    %964 = vmatpush1.bf16.msra.mxu0 0
    %965 = vmatprep.subr.bf16.mxu0 0
    %966 = vmatpush1.bf16.msra.mxu0 0
    %967 = vmatprep.subr.bf16.mxu0 0
    %968 = vmatpush1.bf16.msra.mxu0 0
    %969 = vmatprep.subr.bf16.mxu0 0
    %970 = vmatpush1.bf16.msra.mxu0 0
    %971 = vmatprep.subr.bf16.mxu0 0
    %972 = vmatpush1.bf16.msra.mxu0 0
    %973 = vmatprep.subr.bf16.mxu0 0
    %974 = vmatpush1.bf16.msra.mxu0 0
    %975 = vmatprep.subr.bf16.mxu0 0
    %976 = vmatpush1.bf16.msra.mxu0 0
    %977 = vmatprep.subr.bf16.mxu0 0
    %978 = vmatpush1.bf16.msra.mxu0 0
    %979 = vmatprep.subr.bf16.mxu0 0
    %980 = vmatpush1.bf16.msra.mxu0 0
    %981 = vmatprep.subr.bf16.mxu0 0
    %982 = vmatpush1.bf16.msra.mxu0 0
    %983 = vmatprep.subr.bf16.mxu0 0
    %984 = vmatpush1.bf16.msra.mxu0 0
    %985 = vmatprep.mubr.bf16.mxu0 0
    %986 = vmatmul.mubr.bf16.gmra.mrb[0].mxu0 %v951
    %v987 = vpop.f32.mrb[0].mxu0
    %v988 = vadd.f32 %v936, %v987
    %v989 = vpop.f32.mrb[0].mxu0
    %v990 = vpop.f32.mrb[0].mxu0
    %v991 = vpop.f32.mrb[0].mxu0
    %992 = vdwg.mxu0
    %v993 = vsub.f32 0.0, %v988
    %v994 = vmul.f32 %v993, 1.442695
    %v995 = vpow.pop %v994
    %v996 = vadd.f32 %v995, 1.0
    %v997 = vrcp.pop %v996
    %v998 = vmul.f32 1.0, %v997
    %vm999 = vcmask 25600
    %1000 = vst.msk [vmem:[#allocation4] sm:$0x3] %vm999, %v998
    // Predicated region
    $region46: #{tpu_custom_call.1} parent=1 // pred_check
      _
    $region47: #{tpu_custom_call.1} parent=1 // pred_check_branch
      %1002 = sbr.rel (0) target = $region49
    $region48: #{tpu_custom_call.1} parent=1 // pred_region
      %s1004 = ssub.s32 512, 512
      %1005 = vsyncadd [#allocation3], %s1004
      %s1006 = sshll.u32 [#allocation2], 4
      %s1007 = int_to_ptr.vmem [resolvable:$true] %s1006
      %1012 = dma.vmem_to_hbm [thread:$0]  %s1007, 512, %s11, [#allocation3], 128, 128, 8
    $region49: #{tpu_custom_call.1} parent=1 // pred_fallthru
      _
    // Predicated region
    $region50: #{tpu_custom_call.1} parent=1 // pred_check
      _
    $region51: #{tpu_custom_call.1} parent=1 // pred_check_branch
      %1014 = sbr.rel (0) target = $region53
    $region52: #{tpu_custom_call.1} parent=1 // pred_region
      %s1016 = ssub.s32 32, 32
      %1017 = vsyncadd [#allocation5], %s1016
      %s1019 = sshll.u32 [#allocation4], 4
      %s1020 = int_to_ptr.vmem [resolvable:$true] %s1019
      %1022 = dma.vmem_to_hbm [thread:$0]  %s1020, 32, %s12, [#allocation5]
    $region53: #{tpu_custom_call.1} parent=1 // pred_fallthru
      _
    // Predicated region
    $region54: #{tpu_custom_call.1} parent=1 // pred_check
      _
    $region55: #{tpu_custom_call.1} parent=1 // pred_check_branch
      %1024 = sbr.rel (0) target = $region57
    $region56: #{tpu_custom_call.1} parent=1 // pred_region
      %1025 = dma.done [#allocation3], 512
    $region57: #{tpu_custom_call.1} parent=1 // pred_fallthru
      _
    // Predicated region
    $region58: #{tpu_custom_call.1} parent=1 // pred_check
      _
    $region59: #{tpu_custom_call.1} parent=1 // pred_check_branch
      %1027 = sbr.rel (0) target = $region61
    $region60: #{tpu_custom_call.1} parent=1 // pred_region
      %1028 = dma.done [#allocation5], 32
    $region61: #{tpu_custom_call.1} parent=1 // pred_fallthru
      _
    %1029 = vsyncpa [#allocation3], 1
    %1030 = vsyncpa [#allocation5], 1

// kernel: tpu_custom_call.1
$region0: #{tpu_custom_call.1}
  #allocation0 [shape = 'u32[]', space=smem, size = 0x4, offset = 0x4, fixed_abs, tag = 'smem constant byte address 0x4 - core index']
  #allocation1 [shape = 'u32[144,128]{1,0:T(1,128)}', space=vmem, size = 0x12000, scoped, tag = 'internal scratch']
  %s0 = inlined_call_operand.vmem [shape: bf16[2,16,32], index: 0, kind: input, shape index: {}]
  %s1 = inlined_call_operand.vmem [shape: bf16[2,128,32], index: 1, kind: input, shape index: {}]
  %s2 = inlined_call_operand.vmem [shape: s32[2,1], index: 2, kind: input, shape index: {}]
  %s3 = inlined_call_operand.vmem [shape: bf16[32,64], index: 3, kind: input, shape index: {}]
  %s4 = inlined_call_operand.vmem [shape: f32[1,64], index: 4, kind: input, shape index: {}]
  %s5 = inlined_call_operand.vmem [shape: bf16[2,32,32], index: 5, kind: input, shape index: {}]
  %s6 = inlined_call_operand.vmem [shape: f32[2,1,32], index: 6, kind: input, shape index: {}]
  %s7 = inlined_call_operand.vmem [shape: bf16[32,32], index: 7, kind: input, shape index: {}]
  %s8 = inlined_call_operand.vmem [shape: f32[1,32], index: 8, kind: input, shape index: {}]
  %s9 = inlined_call_operand.vmem [shape: bf16[32,4], index: 9, kind: input, shape index: {}]
  %s10 = inlined_call_operand.vmem [shape: f32[1,4], index: 10, kind: input, shape index: {}]
  %s11 = inlined_call_operand.hbm [shape: f32[2,16,32], index: 11, kind: output, shape index: {0}]
  %s12 = inlined_call_operand.hbm [shape: f32[2,4], index: 12, kind: output, shape index: {1}]
  %13 = xla_tuple %s11, %s12
  %s14 = sld [smem:[#allocation0]]
  $region62: #{tpu_custom_call.1} parent=0
    _
  %s16 = ssub.s32 1, %s14
  %s17 = scalar_select 0, %s16, %s14
  $region1: #{tpu_custom_call.1} parent=0
    #allocation2 [shape = 'u8[16384]{0}', space=vmem, size = 0x4000, scoped, tag = 'output window, operand 0, single buffered']
    #allocation3 [shape = 's32[1]{0}', space=sflag, size = 0x4, scoped, tag = 'scoped memory for tpu_custom_call.1']
    #allocation4 [shape = 'u8[1024]{0}', space=vmem, size = 0x400, scoped, tag = 'output window, operand 1, single buffered']
    #allocation5 [shape = 's32[1]{0}', space=sflag, size = 0x4, scoped, tag = 'scoped memory for tpu_custom_call.1']
    %18 = vsyncpa [#allocation3], 0
    %19 = vsyncpa [#allocation5], 0
    // Predicated region
    $region2: #{tpu_custom_call.1} parent=1 // pred_check
      _
    $region3: #{tpu_custom_call.1} parent=1 // pred_check_branch
      %21 = sbr.rel (0) target = $region5
    $region4: #{tpu_custom_call.1} parent=1 // pred_region
      _
    $region5: #{tpu_custom_call.1} parent=1 // pred_fallthru
      _
    // Predicated region
    $region6: #{tpu_custom_call.1} parent=1 // pred_check
      _
    $region7: #{tpu_custom_call.1} parent=1 // pred_check_branch
      %23 = sbr.rel (0) target = $region9
    $region8: #{tpu_custom_call.1} parent=1 // pred_region
      _
    $region9: #{tpu_custom_call.1} parent=1 // pred_fallthru
      _
    // Predicated region
    $region10: #{tpu_custom_call.1} parent=1 // pred_check
      _
    $region11: #{tpu_custom_call.1} parent=1 // pred_check_branch
      %25 = sbr.rel (0) target = $region13
    $region12: #{tpu_custom_call.1} parent=1 // pred_region
      _
    $region13: #{tpu_custom_call.1} parent=1 // pred_fallthru
      _
    // Predicated region
    $region14: #{tpu_custom_call.1} parent=1 // pred_check
      _
    $region15: #{tpu_custom_call.1} parent=1 // pred_check_branch
      %27 = sbr.rel (0) target = $region17
    $region16: #{tpu_custom_call.1} parent=1 // pred_region
      _
    $region17: #{tpu_custom_call.1} parent=1 // pred_fallthru
      _
    // Predicated region
    $region18: #{tpu_custom_call.1} parent=1 // pred_check
      _
    $region19: #{tpu_custom_call.1} parent=1 // pred_check_branch
      %29 = sbr.rel (0) target = $region21
    $region20: #{tpu_custom_call.1} parent=1 // pred_region
      _
    $region21: #{tpu_custom_call.1} parent=1 // pred_fallthru
      _
    // Predicated region
    $region22: #{tpu_custom_call.1} parent=1 // pred_check
      _
    $region23: #{tpu_custom_call.1} parent=1 // pred_check_branch
      %31 = sbr.rel (0) target = $region25
    $region24: #{tpu_custom_call.1} parent=1 // pred_region
      _
    $region25: #{tpu_custom_call.1} parent=1 // pred_fallthru
      _
    // Predicated region
    $region26: #{tpu_custom_call.1} parent=1 // pred_check
      _
    $region27: #{tpu_custom_call.1} parent=1 // pred_check_branch
      %33 = sbr.rel (0) target = $region29
    $region28: #{tpu_custom_call.1} parent=1 // pred_region
      _
    $region29: #{tpu_custom_call.1} parent=1 // pred_fallthru
      _
    // Predicated region
    $region30: #{tpu_custom_call.1} parent=1 // pred_check
      _
    $region31: #{tpu_custom_call.1} parent=1 // pred_check_branch
      %35 = sbr.rel (0) target = $region33
    $region32: #{tpu_custom_call.1} parent=1 // pred_region
      _
    $region33: #{tpu_custom_call.1} parent=1 // pred_fallthru
      _
    // Predicated region
    $region34: #{tpu_custom_call.1} parent=1 // pred_check
      _
    $region35: #{tpu_custom_call.1} parent=1 // pred_check_branch
      %37 = sbr.rel (0) target = $region37
    $region36: #{tpu_custom_call.1} parent=1 // pred_region
      _
    $region37: #{tpu_custom_call.1} parent=1 // pred_fallthru
      _
    // Predicated region
    $region38: #{tpu_custom_call.1} parent=1 // pred_check
      _
    $region39: #{tpu_custom_call.1} parent=1 // pred_check_branch
      %39 = sbr.rel (0) target = $region41
    $region40: #{tpu_custom_call.1} parent=1 // pred_region
      _
    $region41: #{tpu_custom_call.1} parent=1 // pred_fallthru
      _
    // Predicated region
    $region42: #{tpu_custom_call.1} parent=1 // pred_check
      _
    $region43: #{tpu_custom_call.1} parent=1 // pred_check_branch
      %41 = sbr.rel (0) target = $region45
    $region44: #{tpu_custom_call.1} parent=1 // pred_region
      _
    $region45: #{tpu_custom_call.1} parent=1 // pred_fallthru
      _
    %v43 = vld [vmem:[%s0] sm:$0xf]
    %v44 = vld [vmem:[%s0 + $0x4] sm:$0xf]
    %v45 = vld [vmem:[%s0 + $0x8] sm:$0xf]
    %v46 = vld [vmem:[%s0 + $0xc] sm:$0xf]
    %v47 = vld [vmem:[%s1] sm:$0xf]
    %v48 = vld [vmem:[%s1 + $0x4] sm:$0xf]
    %v49 = vld [vmem:[%s1 + $0x8] sm:$0xf]
    %v50 = vld [vmem:[%s1 + $0xc] sm:$0xf]
    %v51 = vld [vmem:[%s1 + $0x10] sm:$0xf]
    %v52 = vld [vmem:[%s1 + $0x14] sm:$0xf]
    %v53 = vld [vmem:[%s1 + $0x18] sm:$0xf]
    %v54 = vld [vmem:[%s1 + $0x1c] sm:$0xf]
    %v55 = vld [vmem:[%s1 + $0x20] sm:$0xf]
    %v56 = vld [vmem:[%s1 + $0x24] sm:$0xf]
    %v57 = vld [vmem:[%s1 + $0x28] sm:$0xf]
    %v58 = vld [vmem:[%s1 + $0x2c] sm:$0xf]
    %v59 = vld [vmem:[%s1 + $0x30] sm:$0xf]
    %v60 = vld [vmem:[%s1 + $0x34] sm:$0xf]
    %v61 = vld [vmem:[%s1 + $0x38] sm:$0xf]
    %v62 = vld [vmem:[%s1 + $0x3c] sm:$0xf]
    %v63 = vld [vmem:[%s1 + $0x40] sm:$0xf]
    %v64 = vld [vmem:[%s1 + $0x44] sm:$0xf]
    %v65 = vld [vmem:[%s1 + $0x48] sm:$0xf]
    %v66 = vld [vmem:[%s1 + $0x4c] sm:$0xf]
    %v67 = vld [vmem:[%s1 + $0x50] sm:$0xf]
    %v68 = vld [vmem:[%s1 + $0x54] sm:$0xf]
    %v69 = vld [vmem:[%s1 + $0x58] sm:$0xf]
    %v70 = vld [vmem:[%s1 + $0x5c] sm:$0xf]
    %v71 = vld [vmem:[%s1 + $0x60] sm:$0xf]
    %v72 = vld [vmem:[%s1 + $0x64] sm:$0xf]
    %v73 = vld [vmem:[%s1 + $0x68] sm:$0xf]
    %v74 = vld [vmem:[%s1 + $0x6c] sm:$0xf]
    %v75 = vld [vmem:[%s1 + $0x70] sm:$0xf]
    %v76 = vld [vmem:[%s1 + $0x74] sm:$0xf]
    %v77 = vld [vmem:[%s1 + $0x78] sm:$0xf]
    %v78 = vld [vmem:[%s1 + $0x7c] sm:$0xf]
    %v79 = vld [vmem:[%s2] sm:$0x3]
    %v82 = vunpack.c.l.b16 %v43
    %v83 = vunpack.c.l.b16 %v44
    %v84 = vpack.c.b16 %v83, %v82
    %v101 = vunpack.c.l.b16 %v47
    %v102 = vunpack.c.l.b16 %v48
    %v103 = vunpack.c.l.b16 %v49
    %v104 = vunpack.c.l.b16 %v50
    %v105 = vunpack.c.l.b16 %v51
    %v106 = vunpack.c.l.b16 %v52
    %v107 = vunpack.c.l.b16 %v53
    %v108 = vunpack.c.l.b16 %v54
    %v109 = vunpack.c.l.b16 %v55
    %v110 = vunpack.c.l.b16 %v56
    %v111 = vunpack.c.l.b16 %v57
    %v112 = vunpack.c.l.b16 %v58
    %v113 = vunpack.c.l.b16 %v59
    %v114 = vunpack.c.l.b16 %v60
    %v115 = vunpack.c.l.b16 %v61
    %v116 = vunpack.c.l.b16 %v62
    %v117 = vpack.c.b16 %v102, %v101
    %v118 = vpack.c.b16 %v104, %v103
    %v119 = vpack.c.b16 %v106, %v105
    %v120 = vpack.c.b16 %v108, %v107
    %v121 = vpack.c.b16 %v110, %v109
    %v122 = vpack.c.b16 %v112, %v111
    %v123 = vpack.c.b16 %v114, %v113
    %v124 = vpack.c.b16 %v116, %v115
    %vm125 = vcmask 261120
    %v127 = vsel %vm125, %v84, 0
    %v130 = vsel %vm125, %v117, 0
    %v133 = vsel %vm125, %v118, 0
    %v136 = vsel %vm125, %v119, 0
    %v139 = vsel %vm125, %v120, 0
    %v142 = vsel %vm125, %v121, 0
    %v145 = vsel %vm125, %v122, 0
    %v148 = vsel %vm125, %v123, 0
    %v151 = vsel %vm125, %v124, 0
    %153 = vmatprep.subr.bf16.mxu0 0
    %154 = vmatpush1.bf16.xpose.msra.mxu0 %v130
    %155 = vmatprep.subr.bf16.mxu0 0
    %156 = vmatpush1.bf16.xpose.msra.mxu0 %v133
    %157 = vmatprep.subr.bf16.mxu0 0
    %158 = vmatpush1.bf16.xpose.msra.mxu0 %v136
    %159 = vmatprep.subr.bf16.mxu0 0
    %160 = vmatpush1.bf16.xpose.msra.mxu0 %v139
    %161 = vmatprep.subr.bf16.mxu0 0
    %162 = vmatpush1.bf16.xpose.msra.mxu0 %v142
    %163 = vmatprep.subr.bf16.mxu0 0
    %164 = vmatpush1.bf16.xpose.msra.mxu0 %v145
    %165 = vmatprep.subr.bf16.mxu0 0
    %166 = vmatpush1.bf16.xpose.msra.mxu0 %v148
    %167 = vmatprep.subr.bf16.mxu0 0
    %168 = vmatpush1.bf16.xpose.msra.mxu0 %v151
    %169 = vmatprep.subr.bf16.mxu0 0
    %170 = vmatpush1.bf16.xpose.msra.mxu0 0
    %171 = vmatprep.subr.bf16.mxu0 0
    %172 = vmatpush1.bf16.xpose.msra.mxu0 0
    %173 = vmatprep.subr.bf16.mxu0 0
    %174 = vmatpush1.bf16.xpose.msra.mxu0 0
    %175 = vmatprep.subr.bf16.mxu0 0
    %176 = vmatpush1.bf16.xpose.msra.mxu0 0
    %177 = vmatprep.subr.bf16.mxu0 0
    %178 = vmatpush1.bf16.xpose.msra.mxu0 0
    %179 = vmatprep.subr.bf16.mxu0 0
    %180 = vmatpush1.bf16.xpose.msra.mxu0 0
    %181 = vmatprep.subr.bf16.mxu0 0
    %182 = vmatpush1.bf16.xpose.msra.mxu0 0
    %183 = vmatprep.subr.bf16.mxu0 0
    %184 = vmatpush1.bf16.xpose.msra.mxu0 0
    %185 = vmatprep.mubr.bf16.mxu0 0
    %186 = vmatmul.mubr.bf16.gmra.mrb[0].mxu0 %v127
    %v187 = vpop.f32.mrb[0].mxu0
    %v188 = vadd.f32 0.0, %v187
    %v189 = vpop.f32.mrb[0].mxu0
    %v190 = vpop.f32.mrb[0].mxu0
    %v191 = vadd.f32 0.0, %v190
    %v192 = vpop.f32.mrb[0].mxu0
    %193 = vdwg.mxu0
    %v196 = vunpack.c.l.b16 %v45
    %v197 = vunpack.c.l.b16 %v46
    %v198 = vpack.c.b16 %v197, %v196
    %v215 = vunpack.c.l.b16 %v63
    %v216 = vunpack.c.l.b16 %v64
    %v217 = vunpack.c.l.b16 %v65
    %v218 = vunpack.c.l.b16 %v66
    %v219 = vunpack.c.l.b16 %v67
    %v220 = vunpack.c.l.b16 %v68
    %v221 = vunpack.c.l.b16 %v69
    %v222 = vunpack.c.l.b16 %v70
    %v223 = vunpack.c.l.b16 %v71
    %v224 = vunpack.c.l.b16 %v72
    %v225 = vunpack.c.l.b16 %v73
    %v226 = vunpack.c.l.b16 %v74
    %v227 = vunpack.c.l.b16 %v75
    %v228 = vunpack.c.l.b16 %v76
    %v229 = vunpack.c.l.b16 %v77
    %v230 = vunpack.c.l.b16 %v78
    %v231 = vpack.c.b16 %v216, %v215
    %v232 = vpack.c.b16 %v218, %v217
    %v233 = vpack.c.b16 %v220, %v219
    %v234 = vpack.c.b16 %v222, %v221
    %v235 = vpack.c.b16 %v224, %v223
    %v236 = vpack.c.b16 %v226, %v225
    %v237 = vpack.c.b16 %v228, %v227
    %v238 = vpack.c.b16 %v230, %v229
    %v240 = vsel %vm125, %v198, 0
    %v243 = vsel %vm125, %v231, 0
    %v246 = vsel %vm125, %v232, 0
    %v249 = vsel %vm125, %v233, 0
    %v252 = vsel %vm125, %v234, 0
    %v255 = vsel %vm125, %v235, 0
    %v258 = vsel %vm125, %v236, 0
    %v261 = vsel %vm125, %v237, 0
    %v264 = vsel %vm125, %v238, 0
    %266 = vmatprep.subr.bf16.mxu0 0
    %267 = vmatpush1.bf16.xpose.msra.mxu0 %v243
    %268 = vmatprep.subr.bf16.mxu0 0
    %269 = vmatpush1.bf16.xpose.msra.mxu0 %v246
    %270 = vmatprep.subr.bf16.mxu0 0
    %271 = vmatpush1.bf16.xpose.msra.mxu0 %v249
    %272 = vmatprep.subr.bf16.mxu0 0
    %273 = vmatpush1.bf16.xpose.msra.mxu0 %v252
    %274 = vmatprep.subr.bf16.mxu0 0
    %275 = vmatpush1.bf16.xpose.msra.mxu0 %v255
    %276 = vmatprep.subr.bf16.mxu0 0
    %277 = vmatpush1.bf16.xpose.msra.mxu0 %v258
    %278 = vmatprep.subr.bf16.mxu0 0
    %279 = vmatpush1.bf16.xpose.msra.mxu0 %v261
    %280 = vmatprep.subr.bf16.mxu0 0
    %281 = vmatpush1.bf16.xpose.msra.mxu0 %v264
    %282 = vmatprep.subr.bf16.mxu0 0
    %283 = vmatpush1.bf16.xpose.msra.mxu0 0
    %284 = vmatprep.subr.bf16.mxu0 0
    %285 = vmatpush1.bf16.xpose.msra.mxu0 0
    %286 = vmatprep.subr.bf16.mxu0 0
    %287 = vmatpush1.bf16.xpose.msra.mxu0 0
    %288 = vmatprep.subr.bf16.mxu0 0
    %289 = vmatpush1.bf16.xpose.msra.mxu0 0
    %290 = vmatprep.subr.bf16.mxu0 0
    %291 = vmatpush1.bf16.xpose.msra.mxu0 0
    %292 = vmatprep.subr.bf16.mxu0 0
    %293 = vmatpush1.bf16.xpose.msra.mxu0 0
    %294 = vmatprep.subr.bf16.mxu0 0
    %295 = vmatpush1.bf16.xpose.msra.mxu0 0
    %296 = vmatprep.subr.bf16.mxu0 0
    %297 = vmatpush1.bf16.xpose.msra.mxu0 0
    %298 = vmatprep.mubr.bf16.mxu0 0
    %299 = vmatmul.mubr.bf16.gmra.mrb[0].mxu0 %v240
    %v300 = vpop.f32.mrb[0].mxu0
    %v301 = vadd.f32 0.0, %v300
    %v302 = vpop.f32.mrb[0].mxu0
    %v303 = vpop.f32.mrb[0].mxu0
    %v304 = vadd.f32 0.0, %v303
    %v305 = vpop.f32.mrb[0].mxu0
    %306 = vdwg.mxu0
    %vm307 = vcmp.gt.f32.partialorder %v188, 0.0
    %vm308 = vcmp.gt.f32.partialorder %v191, 0.0
    %vm309 = vcmp.gt.f32.partialorder %v301, 0.0
    %vm310 = vcmp.gt.f32.partialorder %v304, 0.0
    %v311 = vmul.f32 %v188, 0.1
    %v312 = vmul.f32 %v191, 0.1
    %v313 = vmul.f32 %v301, 0.1
    %v314 = vmul.f32 %v304, 0.1
    %v315 = vsel %vm307, %v188, %v311
    %v316 = vsel %vm308, %v191, %v312
    %v317 = vsel %vm309, %v301, %v313
    %v318 = vsel %vm310, %v304, %v314
    %v319 = vlaneseq
    %v320 = vand.u32 %v319, 127
    %v322 = vunpack.c.l.s4 1966171168
    %v323 = vunpack.c.0.s8 %v322
    %v324 = vlaneseq
    %v325 = vshrl.u32 %v324, 7
    %v326 = vsub.s32 %v323, %v325
    %v327 = vrot.slane %v79, %v326
    %v328 = vcombine.high %v327, %v327
    %v330 = vunpack.c.l.s4 1966171168
    %v331 = vunpack.c.0.s8 %v330
    %v332 = vlaneseq
    %v333 = vshrl.u32 %v332, 7
    %v334 = vsub.s32 %v331, %v333
    %v335 = vrot.slane %v327, %v334
    %v337 = vunpack.c.l.s4 1966171168
    %v338 = vunpack.c.0.s8 %v337
    %v339 = vlaneseq
    %v340 = vshrl.u32 %v339, 7
    %v341 = vsub.s32 %v338, %v340
    %v342 = vrot.slane %v328, %v341
    %343 = vset.pattern.permute.xlu0 0
    %344 = vperm.xlu0 %343, %v335
    %v345 = vpop.permute.xlu0 %344
    %v346 = vlaneseq
    %v347 = vshrl.u32 %v346, 7
    %v348 = vsub.s32 0, %v347
    %v349 = vrot.slane %v345, %v348
    %350 = vset.pattern.permute.xlu0 0
    %351 = vperm.xlu0 %350, %v342
    %v352 = vpop.permute.xlu0 %351
    %v353 = vlaneseq
    %v354 = vshrl.u32 %v353, 7
    %v355 = vsub.s32 0, %v354
    %v356 = vrot.slane %v352, %v355
    %vm357 = vcmp.lt.s32.totalorder %v320, %v349
    %vm358 = vcmp.lt.s32.totalorder %v320, %v356
    %v359 = vsel %vm357, 1, 0
    %v360 = vsel %vm358, 1, 0
    %vm361 = vcmp.eq.s32.totalorder %v359, 1
    %vm362 = vcmp.eq.s32.totalorder %v360, 1
    %v363 = vsel %vm361, %v315, 0.0
    %v364 = vsel %vm361, %v316, 0.0
    %v365 = vsel %vm362, %v317, 0.0
    %v366 = vsel %vm362, %v318, 0.0
    %v367 = vmul.f32 %v363, %v363
    %v368 = vmul.f32 %v364, %v364
    %v369 = vmul.f32 %v365, %v365
    %v370 = vmul.f32 %v366, %v366
    %371 = vadd.xlane.f32.xlu0 %v367
    %v372 = vpop.xlane.xlu0 %371
    %373 = vadd.xlane.f32.xlu0 %v368
    %v374 = vpop.xlane.xlu0 %373
    %375 = vadd.xlane.f32.xlu0 %v369
    %v376 = vpop.xlane.xlu0 %375
    %377 = vadd.xlane.f32.xlu0 %v370
    %v378 = vpop.xlane.xlu0 %377
    %v379 = vadd.f32 %v372, 1e-16
    %v380 = vadd.f32 %v374, 1e-16
    %v381 = vadd.f32 %v376, 1e-16
    %v382 = vadd.f32 %v378, 1e-16
    %v383 = vrsqrt.pop %v379
    %v384 = vrsqrt.pop %v380
    %v385 = vrsqrt.pop %v381
    %v386 = vrsqrt.pop %v382
    %v387 = vmul.f32 %v363, %v383
    %v388 = vmul.f32 %v364, %v384
    %v389 = vmul.f32 %v365, %v385
    %v390 = vmul.f32 %v366, %v386
    %v391 = vmul.f32 %v387, 4.0
    %v392 = vmul.f32 %v388, 4.0
    %v393 = vmul.f32 %v389, 4.0
    %v394 = vmul.f32 %v390, 4.0
    %v395 = vsel %vm361, %v391, -1e+30
    %v396 = vsel %vm361, %v392, -1e+30
    %v397 = vsel %vm362, %v393, -1e+30
    %v398 = vsel %vm362, %v394, -1e+30
    %399 = vmax.xlane.f32.xlu0 %v395
    %v400 = vpop.xlane.xlu0 %399
    %401 = vmax.xlane.f32.xlu0 %v396
    %v402 = vpop.xlane.xlu0 %401
    %403 = vmax.xlane.f32.xlu0 %v397
    %v404 = vpop.xlane.xlu0 %403
    %405 = vmax.xlane.f32.xlu0 %v398
    %v406 = vpop.xlane.xlu0 %405
    %v407 = vsub.f32 %v395, %v400
    %v408 = vsub.f32 %v396, %v402
    %v409 = vsub.f32 %v397, %v404
    %v410 = vsub.f32 %v398, %v406
    %v411 = vmul.f32 %v407, 1.442695
    %v412 = vpow.pop %v411
    %v413 = vmul.f32 %v408, 1.442695
    %v414 = vpow.pop %v413
    %v415 = vmul.f32 %v409, 1.442695
    %v416 = vpow.pop %v415
    %v417 = vmul.f32 %v410, 1.442695
    %v418 = vpow.pop %v417
    %v419 = vsel %vm361, %v412, 0.0
    %v420 = vsel %vm361, %v414, 0.0
    %v421 = vsel %vm362, %v416, 0.0
    %v422 = vsel %vm362, %v418, 0.0
    %423 = vadd.xlane.f32.xlu0 %v419
    %v424 = vpop.xlane.xlu0 %423
    %425 = vadd.xlane.f32.xlu0 %v420
    %v426 = vpop.xlane.xlu0 %425
    %427 = vadd.xlane.f32.xlu0 %v421
    %v428 = vpop.xlane.xlu0 %427
    %429 = vadd.xlane.f32.xlu0 %v422
    %v430 = vpop.xlane.xlu0 %429
    %v431 = vadd.f32 %v424, 1e-08
    %v432 = vadd.f32 %v426, 1e-08
    %v433 = vadd.f32 %v428, 1e-08
    %v434 = vadd.f32 %v430, 1e-08
    %v435 = vrcp.pop %v431
    %v436 = vrcp.pop %v432
    %v437 = vrcp.pop %v433
    %v438 = vrcp.pop %v434
    %v439 = vmul.f32 %v419, %v435
    %v440 = vmul.f32 %v420, %v436
    %v441 = vmul.f32 %v421, %v437
    %v442 = vmul.f32 %v422, %v438
    %v443 = vpack.c.bf16 %v440, %v439
    %v444 = vpack.c.bf16 %v442, %v441
    %453 = vmatprep.subr.bf16.mxu0 0
    %454 = vmatpush1.bf16.msra.mxu0 %v117
    %455 = vmatprep.subr.bf16.mxu0 0
    %456 = vmatpush1.bf16.msra.mxu0 %v118
    %457 = vmatprep.subr.bf16.mxu0 0
    %458 = vmatpush1.bf16.msra.mxu0 %v119
    %459 = vmatprep.subr.bf16.mxu0 0
    %460 = vmatpush1.bf16.msra.mxu0 %v120
    %461 = vmatprep.subr.bf16.mxu0 0
    %462 = vmatpush1.bf16.msra.mxu0 %v121
    %463 = vmatprep.subr.bf16.mxu0 0
    %464 = vmatpush1.bf16.msra.mxu0 %v122
    %465 = vmatprep.subr.bf16.mxu0 0
    %466 = vmatpush1.bf16.msra.mxu0 %v123
    %467 = vmatprep.subr.bf16.mxu0 0
    %468 = vmatpush1.bf16.msra.mxu0 %v124
    %469 = vmatprep.subr.bf16.mxu0 0
    %470 = vmatpush1.bf16.msra.mxu0 0
    %471 = vmatprep.subr.bf16.mxu0 0
    %472 = vmatpush1.bf16.msra.mxu0 0
    %473 = vmatprep.subr.bf16.mxu0 0
    %474 = vmatpush1.bf16.msra.mxu0 0
    %475 = vmatprep.subr.bf16.mxu0 0
    %476 = vmatpush1.bf16.msra.mxu0 0
    %477 = vmatprep.subr.bf16.mxu0 0
    %478 = vmatpush1.bf16.msra.mxu0 0
    %479 = vmatprep.subr.bf16.mxu0 0
    %480 = vmatpush1.bf16.msra.mxu0 0
    %481 = vmatprep.subr.bf16.mxu0 0
    %482 = vmatpush1.bf16.msra.mxu0 0
    %483 = vmatprep.subr.bf16.mxu0 0
    %484 = vmatpush1.bf16.msra.mxu0 0
    %485 = vmatprep.mubr.bf16.mxu0 0
    %486 = vmatmul.mubr.bf16.gmra.mrb[0].mxu0 %v443
    %v487 = vpop.f32.mrb[0].mxu0
    %v488 = vadd.f32 0.0, %v487
    %v489 = vpop.f32.mrb[0].mxu0
    %v490 = vpop.f32.mrb[0].mxu0
    %v491 = vadd.f32 0.0, %v490
    %v492 = vpop.f32.mrb[0].mxu0
    %493 = vdwg.mxu0
    %502 = vmatprep.subr.bf16.mxu0 0
    %503 = vmatpush1.bf16.msra.mxu0 %v231
    %504 = vmatprep.subr.bf16.mxu0 0
    %505 = vmatpush1.bf16.msra.mxu0 %v232
    %506 = vmatprep.subr.bf16.mxu0 0
    %507 = vmatpush1.bf16.msra.mxu0 %v233
    %508 = vmatprep.subr.bf16.mxu0 0
    %509 = vmatpush1.bf16.msra.mxu0 %v234
    %510 = vmatprep.subr.bf16.mxu0 0
    %511 = vmatpush1.bf16.msra.mxu0 %v235
    %512 = vmatprep.subr.bf16.mxu0 0
    %513 = vmatpush1.bf16.msra.mxu0 %v236
    %514 = vmatprep.subr.bf16.mxu0 0
    %515 = vmatpush1.bf16.msra.mxu0 %v237
    %516 = vmatprep.subr.bf16.mxu0 0
    %517 = vmatpush1.bf16.msra.mxu0 %v238
    %518 = vmatprep.subr.bf16.mxu0 0
    %519 = vmatpush1.bf16.msra.mxu0 0
    %520 = vmatprep.subr.bf16.mxu0 0
    %521 = vmatpush1.bf16.msra.mxu0 0
    %522 = vmatprep.subr.bf16.mxu0 0
    %523 = vmatpush1.bf16.msra.mxu0 0
    %524 = vmatprep.subr.bf16.mxu0 0
    %525 = vmatpush1.bf16.msra.mxu0 0
    %526 = vmatprep.subr.bf16.mxu0 0
    %527 = vmatpush1.bf16.msra.mxu0 0
    %528 = vmatprep.subr.bf16.mxu0 0
    %529 = vmatpush1.bf16.msra.mxu0 0
    %530 = vmatprep.subr.bf16.mxu0 0
    %531 = vmatpush1.bf16.msra.mxu0 0
    %532 = vmatprep.subr.bf16.mxu0 0
    %533 = vmatpush1.bf16.msra.mxu0 0
    %534 = vmatprep.mubr.bf16.mxu0 0
    %535 = vmatmul.mubr.bf16.gmra.mrb[0].mxu0 %v444
    %v536 = vpop.f32.mrb[0].mxu0
    %v537 = vadd.f32 0.0, %v536
    %v538 = vpop.f32.mrb[0].mxu0
    %v539 = vpop.f32.mrb[0].mxu0
    %v540 = vadd.f32 0.0, %v539
    %v541 = vpop.f32.mrb[0].mxu0
    %542 = vdwg.mxu0
    %v543 = vunpack.c.l.bf16 %v43
    %v544 = vunpack.c.l.bf16 %v44
    %v545 = vunpack.c.l.bf16 %v45
    %v546 = vunpack.c.l.bf16 %v46
    %v547 = vpack.c.bf16 %v491, %v488
    %v548 = vpack.c.bf16 %v540, %v537
    %v549 = vld [vmem:[%s3] sm:$0xf]
    %v550 = vld [vmem:[%s3 + $0x4] sm:$0xf]
    %v551 = vld [vmem:[%s3 + $0x8] sm:$0xf]
    %v552 = vld [vmem:[%s3 + $0xc] sm:$0xf]
    %v553 = vld [vmem:[%s4] sm:$0x1]
    %v555 = vlaneseq
    %v556 = vshrl.u32 %v555, 7
    %v557 = vsub.s32 0, %v556
    %v558 = vrot.slane %v553, %v557
    %v564 = vunpack.c.l.b16 %v549
    %v565 = vunpack.c.l.b16 %v550
    %v566 = vunpack.c.l.b16 %v551
    %v567 = vunpack.c.l.b16 %v552
    %v568 = vpack.c.b16 %v565, %v564
    %v569 = vpack.c.b16 %v567, %v566
    %v573 = vsel %vm125, %v547, 0
    %v576 = vsel %vm125, %v548, 0
    %578 = vmatprep.subr.bf16.mxu0 0
    %579 = vmatpush1.bf16.msra.mxu0 %v568
    %580 = vmatprep.subr.bf16.mxu0 0
    %581 = vmatpush1.bf16.msra.mxu0 %v569
    %582 = vmatprep.subr.bf16.mxu0 0
    %583 = vmatpush1.bf16.msra.mxu0 0
    %584 = vmatprep.subr.bf16.mxu0 0
    %585 = vmatpush1.bf16.msra.mxu0 0
    %586 = vmatprep.subr.bf16.mxu0 0
    %587 = vmatpush1.bf16.msra.mxu0 0
    %588 = vmatprep.subr.bf16.mxu0 0
    %589 = vmatpush1.bf16.msra.mxu0 0
    %590 = vmatprep.subr.bf16.mxu0 0
    %591 = vmatpush1.bf16.msra.mxu0 0
    %592 = vmatprep.subr.bf16.mxu0 0
    %593 = vmatpush1.bf16.msra.mxu0 0
    %594 = vmatprep.subr.bf16.mxu0 0
    %595 = vmatpush1.bf16.msra.mxu0 0
    %596 = vmatprep.subr.bf16.mxu0 0
    %597 = vmatpush1.bf16.msra.mxu0 0
    %598 = vmatprep.subr.bf16.mxu0 0
    %599 = vmatpush1.bf16.msra.mxu0 0
    %600 = vmatprep.subr.bf16.mxu0 0
    %601 = vmatpush1.bf16.msra.mxu0 0
    %602 = vmatprep.subr.bf16.mxu0 0
    %603 = vmatpush1.bf16.msra.mxu0 0
    %604 = vmatprep.subr.bf16.mxu0 0
    %605 = vmatpush1.bf16.msra.mxu0 0
    %606 = vmatprep.subr.bf16.mxu0 0
    %607 = vmatpush1.bf16.msra.mxu0 0
    %608 = vmatprep.subr.bf16.mxu0 0
    %609 = vmatpush1.bf16.msra.mxu0 0
    %610 = vmatprep.mubr.bf16.mxu0 0
    %611 = vmatmul.mubr.bf16.gmra.mrb[0].mxu0 %v573
    %v612 = vpop.f32.mrb[0].mxu0
    %v613 = vadd.f32 %v558, %v612
    %v614 = vpop.f32.mrb[0].mxu0
    %v615 = vpop.f32.mrb[0].mxu0
    %v616 = vadd.f32 %v558, %v615
    %v617 = vpop.f32.mrb[0].mxu0
    %618 = vmatprep.mubr.bf16.mxu0 0
    %619 = vmatmul.mubr.bf16.gmra.mrb[0].mxu0 %v576
    %v620 = vpop.f32.mrb[0].mxu0
    %v621 = vadd.f32 %v558, %v620
    %v622 = vpop.f32.mrb[0].mxu0
    %v623 = vpop.f32.mrb[0].mxu0
    %v624 = vadd.f32 %v558, %v623
    %v625 = vpop.f32.mrb[0].mxu0
    %626 = vdwg.mxu0
    %v627 = vtanh.pop %v613
    %v628 = vtanh.pop %v616
    %v629 = vtanh.pop %v621
    %v630 = vtanh.pop %v624
    %v631 = vmul.f32 %v543, %v627
    %v632 = vmul.f32 %v544, %v628
    %v633 = vmul.f32 %v545, %v629
    %v634 = vmul.f32 %v546, %v630
    %639 = vrot.lane.b32.xlu0 %v613, 96
    %v640 = vpop.permute.xlu0 %639
    %641 = vrot.lane.b32.xlu0 %v616, 96
    %v642 = vpop.permute.xlu0 %641
    %643 = vrot.lane.b32.xlu0 %v621, 96
    %v644 = vpop.permute.xlu0 %643
    %645 = vrot.lane.b32.xlu0 %v624, 96
    %v646 = vpop.permute.xlu0 %645
    %v651 = vadd.f32 %v631, %v640
    %v652 = vadd.f32 %v632, %v642
    %v653 = vadd.f32 %v633, %v644
    %v654 = vadd.f32 %v634, %v646
    %v655 = vpack.c.bf16 %v652, %v651
    %v656 = vpack.c.bf16 %v654, %v653
    %v657 = vld [vmem:[%s5] sm:$0xf]
    %v658 = vld [vmem:[%s5 + $0x4] sm:$0xf]
    %v659 = vld [vmem:[%s5 + $0x8] sm:$0xf]
    %v660 = vld [vmem:[%s5 + $0xc] sm:$0xf]
    %v661 = vld [vmem:[%s6] sm:$0x1]
    %v663 = vlaneseq
    %v664 = vshrl.u32 %v663, 7
    %v665 = vsub.s32 0, %v664
    %v666 = vrot.slane %v661, %v665
    %v672 = vunpack.c.l.b16 %v657
    %v673 = vunpack.c.l.b16 %v658
    %v674 = vunpack.c.l.b16 %v659
    %v675 = vunpack.c.l.b16 %v660
    %v676 = vpack.c.b16 %v673, %v672
    %v677 = vpack.c.b16 %v675, %v674
    %v681 = vsel %vm125, %v655, 0
    %v684 = vsel %vm125, %v656, 0
    %686 = vmatprep.subr.bf16.mxu0 0
    %687 = vmatpush1.bf16.msra.mxu0 %v676
    %688 = vmatprep.subr.bf16.mxu0 0
    %689 = vmatpush1.bf16.msra.mxu0 %v677
    %690 = vmatprep.subr.bf16.mxu0 0
    %691 = vmatpush1.bf16.msra.mxu0 0
    %692 = vmatprep.subr.bf16.mxu0 0
    %693 = vmatpush1.bf16.msra.mxu0 0
    %694 = vmatprep.subr.bf16.mxu0 0
    %695 = vmatpush1.bf16.msra.mxu0 0
    %696 = vmatprep.subr.bf16.mxu0 0
    %697 = vmatpush1.bf16.msra.mxu0 0
    %698 = vmatprep.subr.bf16.mxu0 0
    %699 = vmatpush1.bf16.msra.mxu0 0
    %700 = vmatprep.subr.bf16.mxu0 0
    %701 = vmatpush1.bf16.msra.mxu0 0
    %702 = vmatprep.subr.bf16.mxu0 0
    %703 = vmatpush1.bf16.msra.mxu0 0
    %704 = vmatprep.subr.bf16.mxu0 0
    %705 = vmatpush1.bf16.msra.mxu0 0
    %706 = vmatprep.subr.bf16.mxu0 0
    %707 = vmatpush1.bf16.msra.mxu0 0
    %708 = vmatprep.subr.bf16.mxu0 0
    %709 = vmatpush1.bf16.msra.mxu0 0
    %710 = vmatprep.subr.bf16.mxu0 0
    %711 = vmatpush1.bf16.msra.mxu0 0
    %712 = vmatprep.subr.bf16.mxu0 0
    %713 = vmatpush1.bf16.msra.mxu0 0
    %714 = vmatprep.subr.bf16.mxu0 0
    %715 = vmatpush1.bf16.msra.mxu0 0
    %716 = vmatprep.subr.bf16.mxu0 0
    %717 = vmatpush1.bf16.msra.mxu0 0
    %718 = vmatprep.mubr.bf16.mxu0 0
    %719 = vmatmul.mubr.bf16.gmra.mrb[0].mxu0 %v681
    %v720 = vpop.f32.mrb[0].mxu0
    %v721 = vadd.f32 %v666, %v720
    %v722 = vpop.f32.mrb[0].mxu0
    %v723 = vpop.f32.mrb[0].mxu0
    %v724 = vadd.f32 %v666, %v723
    %v725 = vpop.f32.mrb[0].mxu0
    %726 = vmatprep.mubr.bf16.mxu0 0
    %727 = vmatmul.mubr.bf16.gmra.mrb[0].mxu0 %v684
    %v728 = vpop.f32.mrb[0].mxu0
    %v729 = vadd.f32 %v666, %v728
    %v730 = vpop.f32.mrb[0].mxu0
    %v731 = vpop.f32.mrb[0].mxu0
    %v732 = vadd.f32 %v666, %v731
    %v733 = vpop.f32.mrb[0].mxu0
    %734 = vdwg.mxu0
    %v735 = vmax.f32 %v721, 0.0
    %v736 = vmax.f32 %v724, 0.0
    %v737 = vmax.f32 %v729, 0.0
    %v738 = vmax.f32 %v732, 0.0
    %v739 = vpack.c.bf16 %v736, %v735
    %v740 = vpack.c.bf16 %v738, %v737
    %s741 = scalar_lea.vmem %s5, 16
    %v742 = vld [vmem:[%s741] sm:$0xf]
    %v743 = vld [vmem:[%s741 + $0x4] sm:$0xf]
    %v744 = vld [vmem:[%s741 + $0x8] sm:$0xf]
    %v745 = vld [vmem:[%s741 + $0xc] sm:$0xf]
    %s746 = scalar_lea.vmem %s6, 1
    %v747 = vld [vmem:[%s746] sm:$0x1]
    %v749 = vlaneseq
    %v750 = vshrl.u32 %v749, 7
    %v751 = vsub.s32 0, %v750
    %v752 = vrot.slane %v747, %v751
    %v758 = vunpack.c.l.b16 %v742
    %v759 = vunpack.c.l.b16 %v743
    %v760 = vunpack.c.l.b16 %v744
    %v761 = vunpack.c.l.b16 %v745
    %v762 = vpack.c.b16 %v759, %v758
    %v763 = vpack.c.b16 %v761, %v760
    %v767 = vsel %vm125, %v739, 0
    %v770 = vsel %vm125, %v740, 0
    %772 = vmatprep.subr.bf16.mxu0 0
    %773 = vmatpush1.bf16.msra.mxu0 %v762
    %774 = vmatprep.subr.bf16.mxu0 0
    %775 = vmatpush1.bf16.msra.mxu0 %v763
    %776 = vmatprep.subr.bf16.mxu0 0
    %777 = vmatpush1.bf16.msra.mxu0 0
    %778 = vmatprep.subr.bf16.mxu0 0
    %779 = vmatpush1.bf16.msra.mxu0 0
    %780 = vmatprep.subr.bf16.mxu0 0
    %781 = vmatpush1.bf16.msra.mxu0 0
    %782 = vmatprep.subr.bf16.mxu0 0
    %783 = vmatpush1.bf16.msra.mxu0 0
    %784 = vmatprep.subr.bf16.mxu0 0
    %785 = vmatpush1.bf16.msra.mxu0 0
    %786 = vmatprep.subr.bf16.mxu0 0
    %787 = vmatpush1.bf16.msra.mxu0 0
    %788 = vmatprep.subr.bf16.mxu0 0
    %789 = vmatpush1.bf16.msra.mxu0 0
    %790 = vmatprep.subr.bf16.mxu0 0
    %791 = vmatpush1.bf16.msra.mxu0 0
    %792 = vmatprep.subr.bf16.mxu0 0
    %793 = vmatpush1.bf16.msra.mxu0 0
    %794 = vmatprep.subr.bf16.mxu0 0
    %795 = vmatpush1.bf16.msra.mxu0 0
    %796 = vmatprep.subr.bf16.mxu0 0
    %797 = vmatpush1.bf16.msra.mxu0 0
    %798 = vmatprep.subr.bf16.mxu0 0
    %799 = vmatpush1.bf16.msra.mxu0 0
    %800 = vmatprep.subr.bf16.mxu0 0
    %801 = vmatpush1.bf16.msra.mxu0 0
    %802 = vmatprep.subr.bf16.mxu0 0
    %803 = vmatpush1.bf16.msra.mxu0 0
    %804 = vmatprep.mubr.bf16.mxu0 0
    %805 = vmatmul.mubr.bf16.gmra.mrb[0].mxu0 %v767
    %v806 = vpop.f32.mrb[0].mxu0
    %v807 = vadd.f32 %v752, %v806
    %v808 = vpop.f32.mrb[0].mxu0
    %v809 = vpop.f32.mrb[0].mxu0
    %v810 = vadd.f32 %v752, %v809
    %v811 = vpop.f32.mrb[0].mxu0
    %812 = vmatprep.mubr.bf16.mxu0 0
    %813 = vmatmul.mubr.bf16.gmra.mrb[0].mxu0 %v770
    %v814 = vpop.f32.mrb[0].mxu0
    %v815 = vadd.f32 %v752, %v814
    %v816 = vpop.f32.mrb[0].mxu0
    %v817 = vpop.f32.mrb[0].mxu0
    %v818 = vadd.f32 %v752, %v817
    %v819 = vpop.f32.mrb[0].mxu0
    %820 = vdwg.mxu0
    %v821 = vadd.f32 %v807, %v543
    %v822 = vadd.f32 %v810, %v544
    %v823 = vadd.f32 %v815, %v545
    %v824 = vadd.f32 %v818, %v546
    %825 = vst.msk [vmem:[#allocation2] sm:$0xff] %vm125, %v821
    %826 = vst.msk [vmem:[#allocation2 + $0x8] sm:$0xff] %vm125, %v822
    %827 = vst.msk [vmem:[#allocation2 + $0x10] sm:$0xff] %vm125, %v823
    %828 = vst.msk [vmem:[#allocation2 + $0x18] sm:$0xff] %vm125, %v824
    %v829 = vsel %vm125, %v543, 0.0
    %v830 = vsel %vm125, %v544, 0.0
    %v831 = vadd.f32 %v829, %v830
    %v832 = vrot.slane %v831, 4
    %v833 = vadd.f32 %v831, %v832
    %v834 = vrot.slane %v833, 2
    %v835 = vadd.f32 %v833, %v834
    %v836 = vrot.slane %v835, 1
    %v837 = vadd.f32 %v835, %v836
    %v838 = vsel %vm125, %v545, 0.0
    %v839 = vsel %vm125, %v546, 0.0
    %v840 = vadd.f32 %v838, %v839
    %v841 = vrot.slane %v840, 4
    %v842 = vadd.f32 %v840, %v841
    %v843 = vrot.slane %v842, 2
    %v844 = vadd.f32 %v842, %v843
    %v845 = vrot.slane %v844, 1
    %v846 = vadd.f32 %v844, %v845
    %v847 = vrcp.pop 16.0
    %v848 = vmul.f32 %v837, %v847
    %v849 = vmul.f32 %v846, %v847
    %v850 = vpack.c.bf16 %v848, %v848
    %v851 = vpack.c.bf16 %v849, %v849
    %v852 = vld [vmem:[%s7] sm:$0xf]
    %v853 = vld [vmem:[%s7 + $0x4] sm:$0xf]
    %v854 = vld [vmem:[%s7 + $0x8] sm:$0xf]
    %v855 = vld [vmem:[%s7 + $0xc] sm:$0xf]
    %v856 = vld [vmem:[%s8] sm:$0x1]
    %v858 = vlaneseq
    %v859 = vshrl.u32 %v858, 7
    %v860 = vsub.s32 0, %v859
    %v861 = vrot.slane %v856, %v860
    %v865 = vunpack.c.l.b16 %v850
    %v866 = vunpack.c.l.b16 %v851
    %vm867 = vcmask 1041409
    %v868 = vsel %vm867, %v866, %v865
    %v869 = vpack.c.b16 %v868, %v868
    %v874 = vunpack.c.l.b16 %v852
    %v875 = vunpack.c.l.b16 %v853
    %v876 = vunpack.c.l.b16 %v854
    %v877 = vunpack.c.l.b16 %v855
    %v878 = vpack.c.b16 %v875, %v874
    %v879 = vpack.c.b16 %v877, %v876
    %v883 = vsel %vm125, %v869, 0
    %885 = vmatprep.subr.bf16.mxu0 0
    %886 = vmatpush1.bf16.msra.mxu0 %v878
    %887 = vmatprep.subr.bf16.mxu0 0
    %888 = vmatpush1.bf16.msra.mxu0 %v879
    %889 = vmatprep.subr.bf16.mxu0 0
    %890 = vmatpush1.bf16.msra.mxu0 0
    %891 = vmatprep.subr.bf16.mxu0 0
    %892 = vmatpush1.bf16.msra.mxu0 0
    %893 = vmatprep.subr.bf16.mxu0 0
    %894 = vmatpush1.bf16.msra.mxu0 0
    %895 = vmatprep.subr.bf16.mxu0 0
    %896 = vmatpush1.bf16.msra.mxu0 0
    %897 = vmatprep.subr.bf16.mxu0 0
    %898 = vmatpush1.bf16.msra.mxu0 0
    %899 = vmatprep.subr.bf16.mxu0 0
    %900 = vmatpush1.bf16.msra.mxu0 0
    %901 = vmatprep.subr.bf16.mxu0 0
    %902 = vmatpush1.bf16.msra.mxu0 0
    %903 = vmatprep.subr.bf16.mxu0 0
    %904 = vmatpush1.bf16.msra.mxu0 0
    %905 = vmatprep.subr.bf16.mxu0 0
    %906 = vmatpush1.bf16.msra.mxu0 0
    %907 = vmatprep.subr.bf16.mxu0 0
    %908 = vmatpush1.bf16.msra.mxu0 0
    %909 = vmatprep.subr.bf16.mxu0 0
    %910 = vmatpush1.bf16.msra.mxu0 0
    %911 = vmatprep.subr.bf16.mxu0 0
    %912 = vmatpush1.bf16.msra.mxu0 0
    %913 = vmatprep.subr.bf16.mxu0 0
    %914 = vmatpush1.bf16.msra.mxu0 0
    %915 = vmatprep.subr.bf16.mxu0 0
    %916 = vmatpush1.bf16.msra.mxu0 0
    %917 = vmatprep.mubr.bf16.mxu0 0
    %918 = vmatmul.mubr.bf16.gmra.mrb[0].mxu0 %v883
    %v919 = vpop.f32.mrb[0].mxu0
    %v920 = vadd.f32 %v861, %v919
    %v921 = vpop.f32.mrb[0].mxu0
    %v922 = vpop.f32.mrb[0].mxu0
    %v923 = vpop.f32.mrb[0].mxu0
    %924 = vdwg.mxu0
    %v925 = vmax.f32 %v920, 0.0
    %v926 = vpack.c.bf16 %v925, %v925
    %v927 = vld [vmem:[%s9] sm:$0xf]
    %v928 = vld [vmem:[%s9 + $0x4] sm:$0xf]
    %v929 = vld [vmem:[%s9 + $0x8] sm:$0xf]
    %v930 = vld [vmem:[%s9 + $0xc] sm:$0xf]
    %v931 = vld [vmem:[%s10] sm:$0x1]
    %v933 = vlaneseq
    %v934 = vshrl.u32 %v933, 7
    %v935 = vsub.s32 0, %v934
    %v936 = vrot.slane %v931, %v935
    %v942 = vunpack.c.l.b16 %v927
    %v943 = vunpack.c.l.b16 %v928
    %v944 = vunpack.c.l.b16 %v929
    %v945 = vunpack.c.l.b16 %v930
    %v946 = vpack.c.b16 %v943, %v942
    %v947 = vpack.c.b16 %v945, %v944
    %v951 = vsel %vm125, %v926, 0
    %953 = vmatprep.subr.bf16.mxu0 0
    %954 = vmatpush1.bf16.msra.mxu0 %v946
    %955 = vmatprep.subr.bf16.mxu0 0
    %956 = vmatpush1.bf16.msra.mxu0 %v947
    %957 = vmatprep.subr.bf16.mxu0 0
    %958 = vmatpush1.bf16.msra.mxu0 0
    %959 = vmatprep.subr.bf16.mxu0 0
    %960 = vmatpush1.bf16.msra.mxu0 0
    %961 = vmatprep.subr.bf16.mxu0 0
    %962 = vmatpush1.bf16.msra.mxu0 0
    %963 = vmatprep.subr.bf16.mxu0 0
    %964 = vmatpush1.bf16.msra.mxu0 0
    %965 = vmatprep.subr.bf16.mxu0 0
    %966 = vmatpush1.bf16.msra.mxu0 0
    %967 = vmatprep.subr.bf16.mxu0 0
    %968 = vmatpush1.bf16.msra.mxu0 0
    %969 = vmatprep.subr.bf16.mxu0 0
    %970 = vmatpush1.bf16.msra.mxu0 0
    %971 = vmatprep.subr.bf16.mxu0 0
    %972 = vmatpush1.bf16.msra.mxu0 0
    %973 = vmatprep.subr.bf16.mxu0 0
    %974 = vmatpush1.bf16.msra.mxu0 0
    %975 = vmatprep.subr.bf16.mxu0 0
    %976 = vmatpush1.bf16.msra.mxu0 0
    %977 = vmatprep.subr.bf16.mxu0 0
    %978 = vmatpush1.bf16.msra.mxu0 0
    %979 = vmatprep.subr.bf16.mxu0 0
    %980 = vmatpush1.bf16.msra.mxu0 0
    %981 = vmatprep.subr.bf16.mxu0 0
    %982 = vmatpush1.bf16.msra.mxu0 0
    %983 = vmatprep.subr.bf16.mxu0 0
    %984 = vmatpush1.bf16.msra.mxu0 0
    %985 = vmatprep.mubr.bf16.mxu0 0
    %986 = vmatmul.mubr.bf16.gmra.mrb[0].mxu0 %v951
    %v987 = vpop.f32.mrb[0].mxu0
    %v988 = vadd.f32 %v936, %v987
    %v989 = vpop.f32.mrb[0].mxu0
    %v990 = vpop.f32.mrb[0].mxu0
    %v991 = vpop.f32.mrb[0].mxu0
    %992 = vdwg.mxu0
    %v993 = vsub.f32 0.0, %v988
    %v994 = vmul.f32 %v993, 1.442695
    %v995 = vpow.pop %v994
    %v996 = vadd.f32 %v995, 1.0
    %v997 = vrcp.pop %v996
    %v998 = vmul.f32 1.0, %v997
    %vm999 = vcmask 25600
    %1000 = vst.msk [vmem:[#allocation4] sm:$0x3] %vm999, %v998
    // Predicated region
    $region46: #{tpu_custom_call.1} parent=1 // pred_check
      _
    $region47: #{tpu_custom_call.1} parent=1 // pred_check_branch
      %1002 = sbr.rel (0) target = $region49
    $region48: #{tpu_custom_call.1} parent=1 // pred_region
      %s1004 = ssub.s32 512, 512
      %1005 = vsyncadd [#allocation3], %s1004
      %s1006 = sshll.u32 [#allocation2], 4
      %s1007 = int_to_ptr.vmem [resolvable:$true] %s1006
      %1012 = dma.vmem_to_hbm [thread:$0]  %s1007, 512, %s11, [#allocation3], 128, 128, 8
    $region49: #{tpu_custom_call.1} parent=1 // pred_fallthru
      _
    // Predicated region
    $region50: #{tpu_custom_call.1} parent=1 // pred_check
      _
    $region51: #{tpu_custom_call.1} parent=1 // pred_check_branch
      %1014 = sbr.rel (0) target = $region53
    $region52: #{tpu_custom_call.1} parent=1 // pred_region
      %s1016 = ssub.s32 32, 32
      %1017 = vsyncadd [#allocation5], %s1016
      %s1019 = sshll.u32 [#allocation4], 4
      %s1020 = int_to_ptr.vmem [resolvable:$true] %s1019
      %1022 = dma.vmem_to_hbm [thread:$0]  %s1020, 32, %s12, [#allocation5]
    $region53: #{tpu_custom_call.1} parent=1 // pred_fallthru
      _
    // Predicated region
    $region54: #{tpu_custom_call.1} parent=1 // pred_check
      _
    $region55: #{tpu_custom_call.1} parent=1 // pred_check_branch
      %1024 = sbr.rel (0) target = $region57
    $region56: #{tpu_custom_call.1} parent=1 // pred_region
      %1025 = dma.done [#allocation3], 512
    $region57: #{tpu_custom_call.1} parent=1 // pred_fallthru
      _
    // Predicated region
    $region58: #{tpu_custom_call.1} parent=1 // pred_check
      _
    $region59: #{tpu_custom_call.1} parent=1 // pred_check_branch
      %1027 = sbr.rel (0) target = $region61
    $region60: #{tpu_custom_call.1} parent=1 // pred_region
      %1028 = dma.done [#allocation5], 32
    $region61: #{tpu_custom_call.1} parent=1 // pred_fallthru
      _
    %1029 = vsyncpa [#allocation3], 1
    %1030 = vsyncpa [#allocation5], 1

</llo_original>
